<compile_context>
chip_gen: v6e
topology: v6e:2x2x1
jax: 0.10.0
libtpu: 0.0.40
codegen_flags: <defaults>
</compile_context>

<pallas_src>
import functools

import jax
import jax.numpy as jnp
from jax import lax
from jax.experimental import pallas as pl
from jax.experimental.pallas import tpu as pltpu

LANE = 128          # TPU lane width; every in-kernel feature axis is padded to this.
_BIG = 1e30         # "distance" assigned to padded (nonexistent) codebook slots.

# Parameter-slab row layout (all sections 128-lane wide, 8-row aligned).
OFF_W1 = 0                       # (LANE,   LANE)  feature extractor
OFF_W2 = OFF_W1 + LANE           # (2*LANE, LANE)  fused encoder  [h | packed-input]
OFF_W3 = OFF_W2 + 2 * LANE       # (2*LANE, LANE)  fused decoder  [h | z_q]
OFF_CBT = OFF_W3 + 2 * LANE      # (LANE,   LANE)  codebook^T   (for distances)
OFF_CBG = OFF_CBT + LANE         # (LANE,   LANE)  codebook     (for one-hot gather)
OFF_B = OFF_CBG + LANE           # (8,      LANE)  b_fe / b_enc / b_dec / cb_sq
ROWS = OFF_B + 8                 # 904


def _factor_vqvae_kernel(in_ref, p_ref, out_ref):
    """One row-tile: in_ref (T,128) packed inputs, p_ref (904,128) params,
    out_ref (T,384) packed outputs."""
    f32 = jnp.float32
    xin = in_ref[...]                                  # cols [0:F]=firm_char, [F:F+C]=input

    w1 = p_ref[OFF_W1:OFF_W1 + LANE, :]                # (128, 128)
    w2 = p_ref[OFF_W2:OFF_W2 + 2 * LANE, :]            # (256, 128)
    w3 = p_ref[OFF_W3:OFF_W3 + 2 * LANE, :]            # (256, 128)
    cbt = p_ref[OFF_CBT:OFF_CBT + LANE, :]             # (128, 128)  codebook^T (padded)
    cbg = p_ref[OFF_CBG:OFF_CBG + LANE, :]             # (128, 128)  codebook   (padded)
    bias = p_ref[OFF_B:OFF_B + 8, :]                   # (8, 128)
    b_fe = bias[0:1, :]
    b_enc = bias[1:2, :]
    b_dec = bias[2:3, :]
    cb_sq = bias[3:4, :]                               # ||c_k||^2, padded slots = _BIG

    # ---- FeatureExtractor: Linear + LeakyReLU(0.01) --------------------------
    h = jnp.dot(xin, w1, preferred_element_type=f32) + b_fe
    h = jnp.where(h > 0, h, 0.01 * h)

    # ---- FactorEncoder (fused single matmul): tanh([h | input] @ W2 + b) -----
    enc_in = jnp.concatenate([h, xin], axis=-1)        # (T, 256)
    z_e = jnp.tanh(jnp.dot(enc_in, w2, preferred_element_type=f32) + b_enc)

    # ---- VectorQuant: nearest code (squared L2), argmin, one-hot gather ------
    cross = jnp.dot(z_e, cbt, preferred_element_type=f32)          # (T, 128)
    ze_sq = jnp.sum(z_e * z_e, axis=-1, keepdims=True)             # (T, 1)
    dist = jnp.maximum(ze_sq + cb_sq - 2.0 * cross, 0.0)           # clamp cancellation
    min_d = jnp.min(dist, axis=-1, keepdims=True)
    lane = lax.broadcasted_iota(jnp.int32, dist.shape, 1)
    idx = jnp.min(jnp.where(dist <= min_d, lane, LANE),
                  axis=-1, keepdims=True)                          # (T, 1) int32, < K
    one_hot = (lane == idx).astype(f32)                            # (T, 128)
    z_q = jnp.dot(one_hot, cbg, preferred_element_type=f32)        # (T, 128)

    diff = z_e - z_q
    row_sq = jnp.sum(diff * diff, axis=-1, keepdims=True)          # (T, 1)

    # ---- FactorDecoder (fused single matmul): [h | z_q] @ W3 + b -------------
    out = jnp.dot(jnp.concatenate([h, z_q], axis=-1), w3,
                  preferred_element_type=f32) + b_dec              # (T, 128)

    # ---- Pack one lane-dense output slab: [out | z_q | (idx, row_sq, 0...)] --
    misc = (jnp.where(lane == 0, idx.astype(f32), 0.0)
            + jnp.where(lane == 1, row_sq, 0.0))
    out_ref[...] = jnp.concatenate([out, z_q, misc], axis=-1)      # (T, 384)


def _pack_params(params):
    """Pack all weights/biases/codebook into one (ROWS, 128) f32 slab."""
    f32 = jnp.float32
    w_fe = params["w_fe"].astype(f32)          # (F, H)
    w_enc_h = params["w_enc_h"].astype(f32)    # (H, H)
    w_enc_x = params["w_enc_x"].astype(f32)    # (C, H)
    w_dec_h = params["w_dec_h"].astype(f32)    # (H, C)
    w_dec_q = params["w_dec_q"].astype(f32)    # (H, C)
    cb = params["codebook"].astype(f32)        # (K, H)
    F, H = w_fe.shape
    C = w_enc_x.shape[0]
    K = cb.shape[0]
    assert H <= LANE and C <= LANE and K <= LANE and F + C <= LANE

    slab = jnp.zeros((ROWS, LANE), f32)
    # W1: rows index the packed-input columns ([0:F] = firm_char), cols = hidden.
    slab = slab.at[OFF_W1:OFF_W1 + F, :H].set(w_fe)
    # W2: rows [0:128] multiply h, rows [128:256] multiply the packed input
    #     (only its x-columns [F:F+C] carry weight).
    slab = slab.at[OFF_W2:OFF_W2 + H, :H].set(w_enc_h)
    slab = slab.at[OFF_W2 + LANE + F:OFF_W2 + LANE + F + C, :H].set(w_enc_x)
    # W3: rows [0:128] multiply h, rows [128:256] multiply z_q.
    slab = slab.at[OFF_W3:OFF_W3 + H, :C].set(w_dec_h)
    slab = slab.at[OFF_W3 + LANE:OFF_W3 + LANE + H, :C].set(w_dec_q)
    # Codebook, both orientations (no in-kernel transpose needed).
    slab = slab.at[OFF_CBT:OFF_CBT + H, :K].set(cb.T)
    slab = slab.at[OFF_CBG:OFF_CBG + K, :H].set(cb)
    # Bias block: b_fe, b_enc, b_dec, cb_sq (padded code slots get +_BIG).
    slab = slab.at[OFF_B + 0, :H].set(params["b_fe"].astype(f32).reshape(-1))
    slab = slab.at[OFF_B + 1, :H].set(params["b_enc"].astype(f32).reshape(-1))
    slab = slab.at[OFF_B + 2, :C].set(params["b_dec"].astype(f32).reshape(-1))
    cb_sq_row = jnp.full((LANE,), _BIG, f32).at[:K].set(jnp.sum(cb * cb, axis=-1))
    slab = slab.at[OFF_B + 3, :].set(cb_sq_row)
    return slab


@functools.partial(jax.jit, static_argnames=("tile_n",))
def factor_vqvae_forward(x, firm_char, params, *, tile_n=128):
    """x: (N, C) returns; firm_char: (N, F). Returns (output, vq_dict, z_q)."""
    N, C = x.shape
    F = firm_char.shape[1]
    H = params["w_fe"].shape[1]

    p_slab = _pack_params(params)

    # Pack both data tensors into one lane-dense (Npad, 128) slab.
    n_pad = pl.cdiv(N, tile_n) * tile_n
    in_slab = jnp.zeros((n_pad, LANE), jnp.float32)
    in_slab = in_slab.at[:N, :F].set(firm_char.astype(jnp.float32))
    in_slab = in_slab.at[:N, F:F + C].set(x.astype(jnp.float32))

    out_slab = pl.pallas_call(
        _factor_vqvae_kernel,
        out_shape=jax.ShapeDtypeStruct((n_pad, 3 * LANE), jnp.float32),
        grid_spec=pltpu.PrefetchScalarGridSpec(
            num_scalar_prefetch=0,
            grid=(n_pad // tile_n,),
            in_specs=[
                pl.BlockSpec((tile_n, LANE), lambda i: (i, 0)),
                # Constant block index -> parameter slab is DMA'd once and
                # stays resident across all (parallel) row tiles.
                pl.BlockSpec((ROWS, LANE), lambda i: (0, 0)),
            ],
            out_specs=pl.BlockSpec((tile_n, 3 * LANE), lambda i: (i, 0)),
        ),
        compiler_params=pltpu.CompilerParams(
            dimension_semantics=("parallel",)),
    )(in_slab, p_slab)

    # Unpack the lane-dense slab; finish the (tiny) loss reduction here so the
    # grid axis stays fully parallel (no cross-step accumulator needed).
    output = out_slab[:N, 0:C]
    z_q = out_slab[:N, LANE:LANE + H]
    idx = out_slab[:N, 2 * LANE].astype(jnp.int32)
    loss = jnp.sum(out_slab[:N, 2 * LANE + 1]) / (N * H)
    return output, {"q": idx, "loss": loss}, z_q


def init_params(key, input_channel, hidden_size, num_features, num_factors):
    ks = jax.random.split(key, 8)
    f32 = jnp.float32
    scale = 0.1
    return {
        "w_fe": scale * jax.random.normal(ks[0], (num_features, hidden_size), f32),
        "b_fe": jnp.zeros((1, hidden_size), f32),
        "w_enc_h": scale * jax.random.normal(ks[1], (hidden_size, hidden_size), f32),
        "w_enc_x": scale * jax.random.normal(ks[2], (input_channel, hidden_size), f32),
        "b_enc": jnp.zeros((1, hidden_size), f32),
        "codebook": scale * jax.random.normal(ks[3], (num_factors, hidden_size), f32),
        "w_dec_h": scale * jax.random.normal(ks[4], (hidden_size, input_channel), f32),
        "w_dec_q": scale * jax.random.normal(ks[5], (hidden_size, input_channel), f32),
        "b_dec": jnp.zeros((1, input_channel), f32),
    }


def _reference(x, fc, params):
    """Pure-JAX reference of the same forward (unfused), for validation."""
    h = fc @ params["w_fe"] + params["b_fe"]
    h = jnp.where(h > 0, h, 0.01 * h)
    z_e = jnp.tanh(h @ params["w_enc_h"] + x @ params["w_enc_x"] + params["b_enc"])
    cb = params["codebook"]
    d = (jnp.sum(z_e * z_e, axis=-1, keepdims=True)
         + jnp.sum(cb * cb, axis=-1)[None, :] - 2.0 * (z_e @ cb.T))
    idx = jnp.argmin(d, axis=-1).astype(jnp.int32)
    z_q = cb[idx]
    loss = jnp.mean((z_e - z_q) ** 2)
    out = h @ params["w_dec_h"] + z_q @ params["w_dec_q"] + params["b_dec"]
    return out, idx, loss, z_q


if __name__ == "__main__":
    # N stocks (batched so the grid has real work), C return channels,
    # F firm characteristics, H hidden, K codebook factors.
    N, C, F, H, K = 256, 4, 16, 32, 8
    key = jax.random.PRNGKey(0)
    k_x, k_fc, k_p = jax.random.split(key, 3)

    x = jax.random.normal(k_x, (N, C), jnp.float32)           # "input"
    firm_char = jax.random.normal(k_fc, (N, F), jnp.float32)  # "firm_char"
    params = init_params(k_p, input_channel=C, hidden_size=H,
                         num_features=F, num_factors=K)

    output, vq_dict, z_q = factor_vqvae_forward(x, firm_char, params)
    jax.block_until_ready((output, vq_dict["q"], vq_dict["loss"], z_q))

    ref_out, ref_idx, ref_loss, ref_zq = _reference(x, firm_char, params)
    assert output.shape == (N, C) and z_q.shape == (N, H)
    assert vq_dict["q"].shape == (N,) and vq_dict["q"].dtype == jnp.int32
    assert bool(jnp.array_equal(vq_dict["q"], ref_idx))
    assert bool(jnp.allclose(output, ref_out, atol=1e-4, rtol=1e-4))
    assert bool(jnp.allclose(z_q, ref_zq, atol=1e-4, rtol=1e-4))
    assert bool(jnp.allclose(vq_dict["loss"], ref_loss, atol=1e-5, rtol=1e-4))
    print("KERNEL_OK")
</pallas_src>

<mosaic_0001>
module attributes {stable_mosaic.version = 11 : i64} {
  func.func @_factor_vqvae_kernel(%arg0: i32, %arg1: memref<128x128xf32, #tpu.memory_space<vmem>>, %arg2: memref<904x128xf32, #tpu.memory_space<vmem>>, %arg3: memref<128x384xf32, #tpu.memory_space<vmem>>) attributes {dimension_semantics = [#tpu.dimension_semantics<parallel>], iteration_bounds = array<i64: 2>, scalar_prefetch = 0 : i64, scratch_operands = 0 : i64, tpu.core_type = #tpu.core_type<tc>, window_params = [{transform_indices = @transform_0, window_bounds = array<i64: 128, 128>}, {pipeline_mode = #tpu.pipeline_mode<synchronous>, transform_indices = @transform_1, window_bounds = array<i64: 904, 128>}, {transform_indices = @transform_2, window_bounds = array<i64: 128, 384>}]} {
    %c0 = arith.constant 0 : index
    %c0_0 = arith.constant 0 : index
    %0 = vector.load %arg1[%c0, %c0_0] : memref<128x128xf32, #tpu.memory_space<vmem>>, vector<128x128xf32>
    %c0_1 = arith.constant 0 : index
    %c0_2 = arith.constant 0 : index
    %1 = vector.load %arg2[%c0_1, %c0_2] : memref<904x128xf32, #tpu.memory_space<vmem>>, vector<128x128xf32>
    %c128 = arith.constant 128 : index
    %c0_3 = arith.constant 0 : index
    %2 = vector.load %arg2[%c128, %c0_3] : memref<904x128xf32, #tpu.memory_space<vmem>>, vector<256x128xf32>
    %c384 = arith.constant 384 : index
    %c0_4 = arith.constant 0 : index
    %3 = vector.load %arg2[%c384, %c0_4] : memref<904x128xf32, #tpu.memory_space<vmem>>, vector<256x128xf32>
    %c640 = arith.constant 640 : index
    %c0_5 = arith.constant 0 : index
    %4 = vector.load %arg2[%c640, %c0_5] : memref<904x128xf32, #tpu.memory_space<vmem>>, vector<128x128xf32>
    %c768 = arith.constant 768 : index
    %c0_6 = arith.constant 0 : index
    %5 = vector.load %arg2[%c768, %c0_6] : memref<904x128xf32, #tpu.memory_space<vmem>>, vector<128x128xf32>
    %c896 = arith.constant 896 : index
    %c0_7 = arith.constant 0 : index
    %6 = vector.load %arg2[%c896, %c0_7] : memref<904x128xf32, #tpu.memory_space<vmem>>, vector<8x128xf32>
    %7 = vector.extract_strided_slice %6 {offsets = [0, 0], sizes = [1, 128], strides = [1, 1]} : vector<8x128xf32> to vector<1x128xf32>
    %8 = vector.extract_strided_slice %6 {offsets = [1, 0], sizes = [1, 128], strides = [1, 1]} : vector<8x128xf32> to vector<1x128xf32>
    %9 = vector.extract_strided_slice %6 {offsets = [2, 0], sizes = [1, 128], strides = [1, 1]} : vector<8x128xf32> to vector<1x128xf32>
    %10 = vector.extract_strided_slice %6 {offsets = [3, 0], sizes = [1, 128], strides = [1, 1]} : vector<8x128xf32> to vector<1x128xf32>
    %cst = arith.constant dense<0.000000e+00> : vector<128x128xf32>
    %11 = tpu.matmul %0, %1, %cst {dimension_numbers = #tpu.dot_dimension_numbers<[1], [0], [0], [1], [0, 0, 1, 1], [], []>} : vector<128x128xf32>, vector<128x128xf32>, vector<128x128xf32> -> vector<128x128xf32>
    %12 = vector.broadcast %7 : vector<1x128xf32> to vector<128x128xf32>
    %13 = arith.addf %11, %12 : vector<128x128xf32>
    %cst_8 = arith.constant 0.000000e+00 : f32
    %14 = vector.broadcast %cst_8 : f32 to vector<128x128xf32>
    %15 = arith.cmpf ogt, %13, %14 : vector<128x128xf32>
    %cst_9 = arith.constant 0.00999999977 : f32
    %16 = vector.broadcast %cst_9 : f32 to vector<128x128xf32>
    %17 = arith.mulf %16, %13 : vector<128x128xf32>
    %18 = arith.select %15, %13, %17 : vector<128x128xi1>, vector<128x128xf32>
    %19 = tpu.concatenate %18, %0 in 1 : vector<128x128xf32>, vector<128x128xf32> -> vector<128x256xf32>
    %cst_10 = arith.constant dense<0.000000e+00> : vector<128x128xf32>
    %20 = tpu.matmul %19, %2, %cst_10 {dimension_numbers = #tpu.dot_dimension_numbers<[1], [0], [0], [1], [0, 0, 1, 1], [], []>} : vector<128x256xf32>, vector<256x128xf32>, vector<128x128xf32> -> vector<128x128xf32>
    %21 = vector.broadcast %8 : vector<1x128xf32> to vector<128x128xf32>
    %22 = arith.addf %20, %21 : vector<128x128xf32>
    %23 = math.tanh %22 : vector<128x128xf32>
    %cst_11 = arith.constant dense<0.000000e+00> : vector<128x128xf32>
    %24 = tpu.matmul %23, %4, %cst_11 {dimension_numbers = #tpu.dot_dimension_numbers<[1], [0], [0], [1], [0, 0, 1, 1], [], []>} : vector<128x128xf32>, vector<128x128xf32>, vector<128x128xf32> -> vector<128x128xf32>
    %25 = arith.mulf %23, %23 : vector<128x128xf32>
    %cst_12 = arith.constant dense<0.000000e+00> : vector<128xf32>
    %26 = vector.multi_reduction <add>, %25, %cst_12 [1] : vector<128x128xf32> to vector<128xf32>
    %27 = vector.shape_cast %26 : vector<128xf32> to vector<128x1xf32>
    %28 = vector.broadcast %27 : vector<128x1xf32> to vector<128x128xf32>
    %29 = vector.broadcast %10 : vector<1x128xf32> to vector<128x128xf32>
    %30 = arith.addf %28, %29 : vector<128x128xf32>
    %cst_13 = arith.constant 2.000000e+00 : f32
    %31 = vector.broadcast %cst_13 : f32 to vector<128x128xf32>
    %32 = arith.mulf %31, %24 : vector<128x128xf32>
    %33 = arith.subf %30, %32 : vector<128x128xf32>
    %cst_14 = arith.constant 0.000000e+00 : f32
    %34 = vector.broadcast %cst_14 : f32 to vector<128x128xf32>
    %35 = arith.maximumf %33, %34 : vector<128x128xf32>
    %cst_15 = arith.constant dense<0x7F800000> : vector<128xf32>
    %36 = vector.multi_reduction <minimumf>, %35, %cst_15 [1] : vector<128x128xf32> to vector<128xf32>
    %37 = vector.shape_cast %36 : vector<128xf32> to vector<128x1xf32>
    %38 = tpu.iota {dimensions = array<i32: 1>} : vector<128x128xi32>
    %39 = vector.broadcast %37 : vector<128x1xf32> to vector<128x128xf32>
    %40 = arith.cmpf ole, %35, %39 : vector<128x128xf32>
    %c128_i32 = arith.constant 128 : i32
    %41 = vector.broadcast %c128_i32 : i32 to vector<128x128xi32>
    %42 = arith.select %40, %38, %41 : vector<128x128xi1>, vector<128x128xi32>
    %cst_16 = arith.constant dense<2147483647> : vector<128xi32>
    %43 = vector.multi_reduction <minsi>, %42, %cst_16 [1] : vector<128x128xi32> to vector<128xi32>
    %44 = vector.shape_cast %43 : vector<128xi32> to vector<128x1xi32>
    %45 = vector.broadcast %44 : vector<128x1xi32> to vector<128x128xi32>
    %46 = arith.cmpi eq, %38, %45 : vector<128x128xi32>
    %47 = arith.extui %46 : vector<128x128xi1> to vector<128x128xi32>
    %48 = arith.sitofp %47 : vector<128x128xi32> to vector<128x128xf32>
    %cst_17 = arith.constant dense<0.000000e+00> : vector<128x128xf32>
    %49 = tpu.matmul %48, %5, %cst_17 {dimension_numbers = #tpu.dot_dimension_numbers<[1], [0], [0], [1], [0, 0, 1, 1], [], []>} : vector<128x128xf32>, vector<128x128xf32>, vector<128x128xf32> -> vector<128x128xf32>
    %50 = arith.subf %23, %49 : vector<128x128xf32>
    %51 = arith.mulf %50, %50 : vector<128x128xf32>
    %cst_18 = arith.constant dense<0.000000e+00> : vector<128xf32>
    %52 = vector.multi_reduction <add>, %51, %cst_18 [1] : vector<128x128xf32> to vector<128xf32>
    %53 = vector.shape_cast %52 : vector<128xf32> to vector<128x1xf32>
    %54 = tpu.concatenate %18, %49 in 1 : vector<128x128xf32>, vector<128x128xf32> -> vector<128x256xf32>
    %cst_19 = arith.constant dense<0.000000e+00> : vector<128x128xf32>
    %55 = tpu.matmul %54, %3, %cst_19 {dimension_numbers = #tpu.dot_dimension_numbers<[1], [0], [0], [1], [0, 0, 1, 1], [], []>} : vector<128x256xf32>, vector<256x128xf32>, vector<128x128xf32> -> vector<128x128xf32>
    %56 = vector.broadcast %9 : vector<1x128xf32> to vector<128x128xf32>
    %57 = arith.addf %55, %56 : vector<128x128xf32>
    %c0_i32 = arith.constant 0 : i32
    %58 = vector.broadcast %c0_i32 : i32 to vector<128x128xi32>
    %59 = arith.cmpi eq, %38, %58 : vector<128x128xi32>
    %60 = arith.sitofp %44 : vector<128x1xi32> to vector<128x1xf32>
    %cst_20 = arith.constant 0.000000e+00 : f32
    %61 = vector.shape_cast %60 : vector<128x1xf32> to vector<128x1xf32>
    %62 = vector.broadcast %61 : vector<128x1xf32> to vector<128x128xf32>
    %63 = vector.broadcast %cst_20 : f32 to vector<128x128xf32>
    %64 = arith.select %59, %62, %63 : vector<128x128xi1>, vector<128x128xf32>
    %c1_i32 = arith.constant 1 : i32
    %65 = vector.broadcast %c1_i32 : i32 to vector<128x128xi32>
    %66 = arith.cmpi eq, %38, %65 : vector<128x128xi32>
    %cst_21 = arith.constant 0.000000e+00 : f32
    %67 = vector.shape_cast %53 : vector<128x1xf32> to vector<128x1xf32>
    %68 = vector.broadcast %67 : vector<128x1xf32> to vector<128x128xf32>
    %69 = vector.broadcast %cst_21 : f32 to vector<128x128xf32>
    %70 = arith.select %66, %68, %69 : vector<128x128xi1>, vector<128x128xf32>
    %71 = arith.addf %64, %70 : vector<128x128xf32>
    %72 = tpu.concatenate %57, %49, %71 in 1 : vector<128x128xf32>, vector<128x128xf32>, vector<128x128xf32> -> vector<128x384xf32>
    %c0_22 = arith.constant 0 : index
    %c0_23 = arith.constant 0 : index
    %73 = vector.load %arg3[%c0_22, %c0_23] : memref<128x384xf32, #tpu.memory_space<vmem>>, vector<128x384xf32>
    tpu.vector_store %arg3[%c0_22, %c0_23], %72 {strides = array<i32>} : memref<128x384xf32, #tpu.memory_space<vmem>>, vector<128x384xf32>,
    return
  }
  func.func @transform_0(%arg0: i32) -> (i32, i32) {
    %c0_i32 = arith.constant 0 : i32
    %c0_i32_0 = arith.constant 0 : i32
    return %arg0, %c0_i32 : i32, i32
  }
  func.func @transform_1(%arg0: i32) -> (i32, i32) {
    %c0_i32 = arith.constant 0 : i32
    %c0_i32_0 = arith.constant 0 : i32
    %c0_i32_1 = arith.constant 0 : i32
    return %c0_i32, %c0_i32_0 : i32, i32
  }
  func.func @transform_2(%arg0: i32) -> (i32, i32) {
    %c0_i32 = arith.constant 0 : i32
    %c0_i32_0 = arith.constant 0 : i32
    return %arg0, %c0_i32 : i32, i32
  }
}

</mosaic_0001>

<llo_original>
// kernel: factor_vqvae_forward.1
$region0: #{factor_vqvae_forward.1}
  #allocation0 [shape = 'u32[]', space=smem, size = 0x4, offset = 0x4, fixed_abs, tag = 'smem constant byte address 0x4 - core index']
  #allocation1 [shape = 'u32[144,128]{1,0:T(1,128)}', space=vmem, size = 0x12000, scoped, tag = 'internal scratch']
  %s0 = inlined_call_operand.vmem [shape: f32[256,128], index: 0, kind: input, shape index: {}]
  %s1 = inlined_call_operand.vmem [shape: f32[904,128], index: 1, kind: input, shape index: {}]
  %s2 = inlined_call_operand.vmem [shape: f32[256,384], index: 2, kind: output, shape index: {}]
  %s3 = sld [smem:[#allocation0]]
  $region41: #{factor_vqvae_forward.1} parent=0
    _
  %s5 = ssub.s32 1, %s3
  %s6 = scalar_select 0, %s5, %s3
  loop: start=0, step=1, limit=4
  $region2: #{factor_vqvae_forward.1} parent=0 // loop_pre_header
    _
  $region3: #{factor_vqvae_forward.1} parent=0 // loop_header
    %s8 = sphi 0, %s12
    %p9 = scmp.ge.s32.totalorder %s8, 4
    %s18 = sphi 0, %s20
    %s21 = sphi 0, %s18
    %s22 = sphi 0, %s21
    %s38 = sphi 0, %s22
    %s42 = sphi 0, %s42
    %s44 = sphi 0, %s42
    %s45 = sphi 0, %s44
    %s59 = sphi 0, %s45
    %s65 = sphi 0, %s67
    %s68 = sphi 0, %s65
    %s69 = sphi 0, %s68
    %s85 = sphi 0, %s69
  $region4: #{factor_vqvae_forward.1} parent=0 // loop_header_branch
    %11 = sbr.rel (%p9) target = $region8
  $region5: #{factor_vqvae_forward.1} parent=0 // loop_body
    %s13 = ssub.s32 %s8, 1
    %s14 = ssub.s32 %s8, 2
    %s15 = sadd.s32 %s8, 1
    %s16 = ssub.s32 %s8, %s15
    %p17 = scmp.eq.s32.totalorder %s16, 0
    %s19 = sadd.s32 %s18, 1
    %s20 = scalar_select %p17, %s18, %s19
    %p23 = pneg %p17
    %p24 = scmp.eq.s32.totalorder %s8, 1
    %p25 = por %p23, %p24
    %p26 = scmp.ne.s32.totalorder %s18, %s21
    %p27 = scmp.eq.s32.totalorder %s8, 0
    %p28 = por %p26, %p27
    %p29 = scmp.ne.s32.totalorder %s18, %s21
    %p30 = scmp.eq.s32.totalorder %s13, 1
    %p31 = por %p29, %p30
    %p32 = scmp.ne.s32.totalorder %s21, %s22
    %p33 = scmp.eq.s32.totalorder %s13, 0
    %p34 = por %p32, %p33
    %p35 = scmp.ne.s32.totalorder %s21, %s22
    %p36 = scmp.eq.s32.totalorder %s14, 1
    %p37 = por %p35, %p36
    %p39 = scmp.ne.s32.totalorder %s22, %s38
    %p40 = scmp.eq.s32.totalorder %s14, 0
    %p41 = por %p39, %p40
    %s43 = sadd.s32 %s42, 1
    %p46 = scmp.eq.s32.totalorder %s8, 1
    %p47 = scmp.ne.s32.totalorder %s42, %s44
    %p48 = scmp.eq.s32.totalorder %s8, 0
    %p49 = por %p47, %p48
    %p50 = scmp.ne.s32.totalorder %s42, %s44
    %p51 = scmp.eq.s32.totalorder %s13, 1
    %p52 = por %p50, %p51
    %p53 = scmp.ne.s32.totalorder %s44, %s45
    %p54 = scmp.eq.s32.totalorder %s13, 0
    %p55 = por %p53, %p54
    %p56 = scmp.ne.s32.totalorder %s44, %s45
    %p57 = scmp.eq.s32.totalorder %s14, 1
    %p58 = por %p56, %p57
    %p60 = scmp.ne.s32.totalorder %s45, %s59
    %p61 = scmp.eq.s32.totalorder %s14, 0
    %p62 = por %p60, %p61
    %s63 = ssub.s32 %s8, %s15
    %p64 = scmp.eq.s32.totalorder %s63, 0
    %s66 = sadd.s32 %s65, 1
    %s67 = scalar_select %p64, %s65, %s66
    %p70 = pneg %p64
    %p71 = scmp.eq.s32.totalorder %s8, 1
    %p72 = por %p70, %p71
    %p73 = scmp.ne.s32.totalorder %s65, %s68
    %p74 = scmp.eq.s32.totalorder %s8, 0
    %p75 = por %p73, %p74
    %p76 = scmp.ne.s32.totalorder %s65, %s68
    %p77 = scmp.eq.s32.totalorder %s13, 1
    %p78 = por %p76, %p77
    %p79 = scmp.ne.s32.totalorder %s68, %s69
    %p80 = scmp.eq.s32.totalorder %s13, 0
    %p81 = por %p79, %p80
    %p82 = scmp.ne.s32.totalorder %s68, %s69
    %p83 = scmp.eq.s32.totalorder %s14, 1
    %p84 = por %p82, %p83
    %p86 = scmp.ne.s32.totalorder %s69, %s85
    %p87 = scmp.eq.s32.totalorder %s14, 0
    %p88 = por %p86, %p87
    %p89 = scmp.le.s32.totalorder 1, %s8
    %p90 = scmp.lt.s32.totalorder %s8, 3
    %p91 = pnand %p89, %p90
    %p92 = pneg %p91
    // Predicated region
    $region9: #{factor_vqvae_forward.1} parent=5 // pred_check
      _
    $region10: #{factor_vqvae_forward.1} parent=5 // pred_check_branch
      %94 = sbr.rel (%p91) target = $region12
    $region11: #{factor_vqvae_forward.1} parent=5 // pred_region
      %s95 = ssub.s32 %s8, 1
      // Predicated region
      $region13: #{factor_vqvae_forward.1} parent=11 // pred_check
        %p96 = pneg %p55
      $region14: #{factor_vqvae_forward.1} parent=11 // pred_check_branch
        %98 = sbr.rel (%p96) target = $region16
      $region15: #{factor_vqvae_forward.1} parent=11 // pred_region
        _
      $region16: #{factor_vqvae_forward.1} parent=11 // pred_fallthru
        _
    $region12: #{factor_vqvae_forward.1} parent=5 // pred_fallthru
      _
    %p99 = scmp.lt.s32.totalorder %s8, 2
    // Predicated region
    $region17: #{factor_vqvae_forward.1} parent=5 // pred_check
      %p100 = pneg %p99
    $region18: #{factor_vqvae_forward.1} parent=5 // pred_check_branch
      %102 = sbr.rel (%p100) target = $region20
    $region19: #{factor_vqvae_forward.1} parent=5 // pred_region
      // Predicated region
      $region21: #{factor_vqvae_forward.1} parent=19 // pred_check
        %p103 = pneg %p28
      $region22: #{factor_vqvae_forward.1} parent=19 // pred_check_branch
        %105 = sbr.rel (%p103) target = $region24
      $region23: #{factor_vqvae_forward.1} parent=19 // pred_region
        %s106 = smul.u32 16, %s8
        %p107 = scmp.lt.s32.totalorder %s106, 31
        %s108 = scalar_select %p107, %s106, 31
        %s109 = smul.addr %s108, 8
        %s110 = scalar_lea.vmem %s0, %s109
        %s111 = smul.u32 16, %s8
      $region24: #{factor_vqvae_forward.1} parent=19 // pred_fallthru
        _
    $region20: #{factor_vqvae_forward.1} parent=5 // pred_fallthru
      _
    %p112 = scmp.le.s32.totalorder 1, %s8
    %p113 = scmp.lt.s32.totalorder %s8, 3
    %p114 = pnand %p112, %p113
    %p115 = pneg %p114
    // Predicated region
    $region25: #{factor_vqvae_forward.1} parent=5 // pred_check
      _
    $region26: #{factor_vqvae_forward.1} parent=5 // pred_check_branch
      %117 = sbr.rel (%p114) target = $region28
    $region27: #{factor_vqvae_forward.1} parent=5 // pred_region
      %s118 = ssub.s32 %s8, 1
      %s119 = smul.u32 16, %s13
      %p120 = scmp.lt.s32.totalorder %s119, 31
      %s121 = scalar_select %p120, %s119, 31
      %s122 = smul.addr %s121, 8
      %s123 = scalar_lea.vmem %s0, %s122
      %p124 = pneg %p34
      %p125 = pneg %p31
      %p126 = pneg %p55
      %p127 = pneg %p52
      %p128 = pneg %p81
      %p129 = pneg %p78
      %s130 = smul.u32 16, %s13
      %p131 = scmp.lt.s32.totalorder %s130, 31
      %s132 = scalar_select %p131, %s130, 31
      %s133 = smul.addr %s132, 3
      %s134 = smul.addr %s133, 8
      %s135 = scalar_lea.vmem %s2, %s134
      %s136 = smul.u32 16, %s13
      %p137 = scmp.lt.s32.totalorder %s136, 31
      %s138 = scalar_select %p137, %s136, 31
      %s139 = smul.addr %s138, 8
      %s140 = scalar_lea.vmem %s0, %s139
      %s141 = smul.u32 16, %s13
      %s142 = smul.u32 16, %s13
      %p143 = scmp.lt.s32.totalorder %s142, 31
      %s144 = scalar_select %p143, %s142, 31
      %s145 = smul.addr %s144, 3
      %s146 = smul.addr %s145, 8
      %s147 = scalar_lea.vmem %s2, %s146
      %s148 = smul.u32 16, %s13
      %v149 = vld [vmem:[%s140] sm:$0xff]
      %v150 = vld [vmem:[%s140 + $0x8] sm:$0xff]
      %v151 = vld [vmem:[%s140 + $0x10] sm:$0xff]
      %v152 = vld [vmem:[%s140 + $0x18] sm:$0xff]
      %v153 = vld [vmem:[%s140 + $0x20] sm:$0xff]
      %v154 = vld [vmem:[%s140 + $0x28] sm:$0xff]
      %v155 = vld [vmem:[%s140 + $0x30] sm:$0xff]
      %v156 = vld [vmem:[%s140 + $0x38] sm:$0xff]
      %v157 = vld [vmem:[%s140 + $0x40] sm:$0xff]
      %v158 = vld [vmem:[%s140 + $0x48] sm:$0xff]
      %v159 = vld [vmem:[%s140 + $0x50] sm:$0xff]
      %v160 = vld [vmem:[%s140 + $0x58] sm:$0xff]
      %v161 = vld [vmem:[%s140 + $0x60] sm:$0xff]
      %v162 = vld [vmem:[%s140 + $0x68] sm:$0xff]
      %v163 = vld [vmem:[%s140 + $0x70] sm:$0xff]
      %v164 = vld [vmem:[%s140 + $0x78] sm:$0xff]
      %v165 = vld [vmem:[%s1] sm:$0xff]
      %v166 = vld [vmem:[%s1 + $0x8] sm:$0xff]
      %v167 = vld [vmem:[%s1 + $0x10] sm:$0xff]
      %v168 = vld [vmem:[%s1 + $0x18] sm:$0xff]
      %v169 = vld [vmem:[%s1 + $0x20] sm:$0xff]
      %v170 = vld [vmem:[%s1 + $0x28] sm:$0xff]
      %v171 = vld [vmem:[%s1 + $0x30] sm:$0xff]
      %v172 = vld [vmem:[%s1 + $0x38] sm:$0xff]
      %v173 = vld [vmem:[%s1 + $0x40] sm:$0xff]
      %v174 = vld [vmem:[%s1 + $0x48] sm:$0xff]
      %v175 = vld [vmem:[%s1 + $0x50] sm:$0xff]
      %v176 = vld [vmem:[%s1 + $0x58] sm:$0xff]
      %v177 = vld [vmem:[%s1 + $0x60] sm:$0xff]
      %v178 = vld [vmem:[%s1 + $0x68] sm:$0xff]
      %v179 = vld [vmem:[%s1 + $0x70] sm:$0xff]
      %v180 = vld [vmem:[%s1 + $0x78] sm:$0xff]
      %v181 = vld [vmem:[%s1 + $0x80] sm:$0xff]
      %v182 = vld [vmem:[%s1 + $0x88] sm:$0xff]
      %v183 = vld [vmem:[%s1 + $0x90] sm:$0xff]
      %v184 = vld [vmem:[%s1 + $0x98] sm:$0xff]
      %v185 = vld [vmem:[%s1 + $0xa0] sm:$0xff]
      %v186 = vld [vmem:[%s1 + $0xa8] sm:$0xff]
      %v187 = vld [vmem:[%s1 + $0xb0] sm:$0xff]
      %v188 = vld [vmem:[%s1 + $0xb8] sm:$0xff]
      %v189 = vld [vmem:[%s1 + $0xc0] sm:$0xff]
      %v190 = vld [vmem:[%s1 + $0xc8] sm:$0xff]
      %v191 = vld [vmem:[%s1 + $0xd0] sm:$0xff]
      %v192 = vld [vmem:[%s1 + $0xd8] sm:$0xff]
      %v193 = vld [vmem:[%s1 + $0xe0] sm:$0xff]
      %v194 = vld [vmem:[%s1 + $0xe8] sm:$0xff]
      %v195 = vld [vmem:[%s1 + $0xf0] sm:$0xff]
      %v196 = vld [vmem:[%s1 + $0xf8] sm:$0xff]
      %v197 = vld [vmem:[%s1 + $0x100] sm:$0xff]
      %v198 = vld [vmem:[%s1 + $0x108] sm:$0xff]
      %v199 = vld [vmem:[%s1 + $0x110] sm:$0xff]
      %v200 = vld [vmem:[%s1 + $0x118] sm:$0xff]
      %v201 = vld [vmem:[%s1 + $0x120] sm:$0xff]
      %v202 = vld [vmem:[%s1 + $0x128] sm:$0xff]
      %v203 = vld [vmem:[%s1 + $0x130] sm:$0xff]
      %v204 = vld [vmem:[%s1 + $0x138] sm:$0xff]
      %v205 = vld [vmem:[%s1 + $0x140] sm:$0xff]
      %v206 = vld [vmem:[%s1 + $0x148] sm:$0xff]
      %v207 = vld [vmem:[%s1 + $0x150] sm:$0xff]
      %v208 = vld [vmem:[%s1 + $0x158] sm:$0xff]
      %v209 = vld [vmem:[%s1 + $0x160] sm:$0xff]
      %v210 = vld [vmem:[%s1 + $0x168] sm:$0xff]
      %v211 = vld [vmem:[%s1 + $0x170] sm:$0xff]
      %v212 = vld [vmem:[%s1 + $0x178] sm:$0xff]
      %v213 = vld [vmem:[%s1 + $0x180] sm:$0xff]
      %v214 = vld [vmem:[%s1 + $0x188] sm:$0xff]
      %v215 = vld [vmem:[%s1 + $0x190] sm:$0xff]
      %v216 = vld [vmem:[%s1 + $0x198] sm:$0xff]
      %v217 = vld [vmem:[%s1 + $0x1a0] sm:$0xff]
      %v218 = vld [vmem:[%s1 + $0x1a8] sm:$0xff]
      %v219 = vld [vmem:[%s1 + $0x1b0] sm:$0xff]
      %v220 = vld [vmem:[%s1 + $0x1b8] sm:$0xff]
      %v221 = vld [vmem:[%s1 + $0x1c0] sm:$0xff]
      %v222 = vld [vmem:[%s1 + $0x1c8] sm:$0xff]
      %v223 = vld [vmem:[%s1 + $0x1d0] sm:$0xff]
      %v224 = vld [vmem:[%s1 + $0x1d8] sm:$0xff]
      %v225 = vld [vmem:[%s1 + $0x1e0] sm:$0xff]
      %v226 = vld [vmem:[%s1 + $0x1e8] sm:$0xff]
      %v227 = vld [vmem:[%s1 + $0x1f0] sm:$0xff]
      %v228 = vld [vmem:[%s1 + $0x1f8] sm:$0xff]
      %v229 = vld [vmem:[%s1 + $0x200] sm:$0xff]
      %v230 = vld [vmem:[%s1 + $0x208] sm:$0xff]
      %v231 = vld [vmem:[%s1 + $0x210] sm:$0xff]
      %v232 = vld [vmem:[%s1 + $0x218] sm:$0xff]
      %v233 = vld [vmem:[%s1 + $0x220] sm:$0xff]
      %v234 = vld [vmem:[%s1 + $0x228] sm:$0xff]
      %v235 = vld [vmem:[%s1 + $0x230] sm:$0xff]
      %v236 = vld [vmem:[%s1 + $0x238] sm:$0xff]
      %v237 = vld [vmem:[%s1 + $0x240] sm:$0xff]
      %v238 = vld [vmem:[%s1 + $0x248] sm:$0xff]
      %v239 = vld [vmem:[%s1 + $0x250] sm:$0xff]
      %v240 = vld [vmem:[%s1 + $0x258] sm:$0xff]
      %v241 = vld [vmem:[%s1 + $0x260] sm:$0xff]
      %v242 = vld [vmem:[%s1 + $0x268] sm:$0xff]
      %v243 = vld [vmem:[%s1 + $0x270] sm:$0xff]
      %v244 = vld [vmem:[%s1 + $0x278] sm:$0xff]
      %v245 = vld [vmem:[%s1 + $0x280] sm:$0xff]
      %v246 = vld [vmem:[%s1 + $0x288] sm:$0xff]
      %v247 = vld [vmem:[%s1 + $0x290] sm:$0xff]
      %v248 = vld [vmem:[%s1 + $0x298] sm:$0xff]
      %v249 = vld [vmem:[%s1 + $0x2a0] sm:$0xff]
      %v250 = vld [vmem:[%s1 + $0x2a8] sm:$0xff]
      %v251 = vld [vmem:[%s1 + $0x2b0] sm:$0xff]
      %v252 = vld [vmem:[%s1 + $0x2b8] sm:$0xff]
      %v253 = vld [vmem:[%s1 + $0x2c0] sm:$0xff]
      %v254 = vld [vmem:[%s1 + $0x2c8] sm:$0xff]
      %v255 = vld [vmem:[%s1 + $0x2d0] sm:$0xff]
      %v256 = vld [vmem:[%s1 + $0x2d8] sm:$0xff]
      %v257 = vld [vmem:[%s1 + $0x2e0] sm:$0xff]
      %v258 = vld [vmem:[%s1 + $0x2e8] sm:$0xff]
      %v259 = vld [vmem:[%s1 + $0x2f0] sm:$0xff]
      %v260 = vld [vmem:[%s1 + $0x2f8] sm:$0xff]
      %v261 = vld [vmem:[%s1 + $0x300] sm:$0xff]
      %v262 = vld [vmem:[%s1 + $0x308] sm:$0xff]
      %v263 = vld [vmem:[%s1 + $0x310] sm:$0xff]
      %v264 = vld [vmem:[%s1 + $0x318] sm:$0xff]
      %v265 = vld [vmem:[%s1 + $0x320] sm:$0xff]
      %v266 = vld [vmem:[%s1 + $0x328] sm:$0xff]
      %v267 = vld [vmem:[%s1 + $0x330] sm:$0xff]
      %v268 = vld [vmem:[%s1 + $0x338] sm:$0xff]
      %v269 = vld [vmem:[%s1 + $0x340] sm:$0xff]
      %v270 = vld [vmem:[%s1 + $0x348] sm:$0xff]
      %v271 = vld [vmem:[%s1 + $0x350] sm:$0xff]
      %v272 = vld [vmem:[%s1 + $0x358] sm:$0xff]
      %v273 = vld [vmem:[%s1 + $0x360] sm:$0xff]
      %v274 = vld [vmem:[%s1 + $0x368] sm:$0xff]
      %v275 = vld [vmem:[%s1 + $0x370] sm:$0xff]
      %v276 = vld [vmem:[%s1 + $0x378] sm:$0xff]
      %v277 = vld [vmem:[%s1 + $0x380] sm:$0xff]
      %v278 = vlaneseq
      %v279 = vshrl.u32 %v278, 7
      %v280 = vsub.s32 0, %v279
      %v281 = vrot.slane %v277, %v280
      %282 = vmatprep.subr.mxu0 0.0
      %283 = vmatpush1.msra.mxu0 %v180
      %284 = vmatprep.subr.mxu0 0.0
      %285 = vmatpush1.msra.mxu0 %v179
      %286 = vmatprep.subr.mxu0 0.0
      %287 = vmatpush1.msra.mxu0 %v178
      %288 = vmatprep.subr.mxu0 0.0
      %289 = vmatpush1.msra.mxu0 %v177
      %290 = vmatprep.subr.mxu0 0.0
      %291 = vmatpush1.msra.mxu0 %v176
      %292 = vmatprep.subr.mxu0 0.0
      %293 = vmatpush1.msra.mxu0 %v175
      %294 = vmatprep.subr.mxu0 0.0
      %295 = vmatpush1.msra.mxu0 %v174
      %296 = vmatprep.subr.mxu0 0.0
      %297 = vmatpush1.msra.mxu0 %v173
      %298 = vmatprep.subr.mxu0 0.0
      %299 = vmatpush1.msra.mxu0 %v172
      %300 = vmatprep.subr.mxu0 0.0
      %301 = vmatpush1.msra.mxu0 %v171
      %302 = vmatprep.subr.mxu0 0.0
      %303 = vmatpush1.msra.mxu0 %v170
      %304 = vmatprep.subr.mxu0 0.0
      %305 = vmatpush1.msra.mxu0 %v169
      %306 = vmatprep.subr.mxu0 0.0
      %307 = vmatpush1.msra.mxu0 %v168
      %308 = vmatprep.subr.mxu0 0.0
      %309 = vmatpush1.msra.mxu0 %v167
      %310 = vmatprep.subr.mxu0 0.0
      %311 = vmatpush1.msra.mxu0 %v166
      %312 = vmatprep.subr.mxu0 0.0
      %313 = vmatpush1.msra.mxu0 %v165
      %314 = vmatprep.subr.mxu0 0.0
      %315 = vmatpush2.msra.mxu0 0.0
      %316 = vmatprep.subr.mxu0 0.0
      %317 = vmatpush2.msra.mxu0 0.0
      %318 = vmatprep.subr.mxu0 0.0
      %319 = vmatpush2.msra.mxu0 0.0
      %320 = vmatprep.subr.mxu0 0.0
      %321 = vmatpush2.msra.mxu0 0.0
      %322 = vmatprep.subr.mxu0 0.0
      %323 = vmatpush2.msra.mxu0 0.0
      %324 = vmatprep.subr.mxu0 0.0
      %325 = vmatpush2.msra.mxu0 0.0
      %326 = vmatprep.subr.mxu0 0.0
      %327 = vmatpush2.msra.mxu0 0.0
      %328 = vmatprep.subr.mxu0 0.0
      %329 = vmatpush2.msra.mxu0 0.0
      %330 = vmatprep.subr.mxu0 0.0
      %331 = vmatpush2.msra.mxu0 0.0
      %332 = vmatprep.subr.mxu0 0.0
      %333 = vmatpush2.msra.mxu0 0.0
      %334 = vmatprep.subr.mxu0 0.0
      %335 = vmatpush2.msra.mxu0 0.0
      %336 = vmatprep.subr.mxu0 0.0
      %337 = vmatpush2.msra.mxu0 0.0
      %338 = vmatprep.subr.mxu0 0.0
      %339 = vmatpush2.msra.mxu0 0.0
      %340 = vmatprep.subr.mxu0 0.0
      %341 = vmatpush2.msra.mxu0 0.0
      %342 = vmatprep.subr.mxu0 0.0
      %343 = vmatpush2.msra.mxu0 0.0
      %344 = vmatprep.subr.mxu0 0.0
      %345 = vmatpush2.msra.mxu0 0.0
      %346 = vmatprep.mubr.f32.mxu0 0.0
      %347 = vmatmul.mubr.f32.gmra.mxu0 %v149
      %v348 = vpop.f32.mrf.mxu0
      %v349 = vadd.f32 %v281, %v348
      %v350 = vpop.f32.mrf.mxu0
      %351 = vmatprep.mubr.f32.mxu0 0.0
      %352 = vmatmul.mubr.f32.gmra.mxu0 %v150
      %v353 = vpop.f32.mrf.mxu0
      %v354 = vadd.f32 %v281, %v353
      %v355 = vpop.f32.mrf.mxu0
      %356 = vmatprep.mubr.f32.mxu0 0.0
      %357 = vmatmul.mubr.f32.gmra.mxu0 %v151
      %v358 = vpop.f32.mrf.mxu0
      %v359 = vadd.f32 %v281, %v358
      %v360 = vpop.f32.mrf.mxu0
      %361 = vmatprep.mubr.f32.mxu0 0.0
      %362 = vmatmul.mubr.f32.gmra.mxu0 %v152
      %v363 = vpop.f32.mrf.mxu0
      %v364 = vadd.f32 %v281, %v363
      %v365 = vpop.f32.mrf.mxu0
      %366 = vmatprep.mubr.f32.mxu0 0.0
      %367 = vmatmul.mubr.f32.gmra.mxu0 %v153
      %v368 = vpop.f32.mrf.mxu0
      %v369 = vadd.f32 %v281, %v368
      %v370 = vpop.f32.mrf.mxu0
      %371 = vmatprep.mubr.f32.mxu0 0.0
      %372 = vmatmul.mubr.f32.gmra.mxu0 %v154
      %v373 = vpop.f32.mrf.mxu0
      %v374 = vadd.f32 %v281, %v373
      %v375 = vpop.f32.mrf.mxu0
      %376 = vmatprep.mubr.f32.mxu0 0.0
      %377 = vmatmul.mubr.f32.gmra.mxu0 %v155
      %v378 = vpop.f32.mrf.mxu0
      %v379 = vadd.f32 %v281, %v378
      %v380 = vpop.f32.mrf.mxu0
      %381 = vmatprep.mubr.f32.mxu0 0.0
      %382 = vmatmul.mubr.f32.gmra.mxu0 %v156
      %v383 = vpop.f32.mrf.mxu0
      %v384 = vadd.f32 %v281, %v383
      %v385 = vpop.f32.mrf.mxu0
      %386 = vmatprep.mubr.f32.mxu0 0.0
      %387 = vmatmul.mubr.f32.gmra.mxu0 %v157
      %v388 = vpop.f32.mrf.mxu0
      %v389 = vadd.f32 %v281, %v388
      %v390 = vpop.f32.mrf.mxu0
      %391 = vmatprep.mubr.f32.mxu0 0.0
      %392 = vmatmul.mubr.f32.gmra.mxu0 %v158
      %v393 = vpop.f32.mrf.mxu0
      %v394 = vadd.f32 %v281, %v393
      %v395 = vpop.f32.mrf.mxu0
      %396 = vmatprep.mubr.f32.mxu0 0.0
      %397 = vmatmul.mubr.f32.gmra.mxu0 %v159
      %v398 = vpop.f32.mrf.mxu0
      %v399 = vadd.f32 %v281, %v398
      %v400 = vpop.f32.mrf.mxu0
      %401 = vmatprep.mubr.f32.mxu0 0.0
      %402 = vmatmul.mubr.f32.gmra.mxu0 %v160
      %v403 = vpop.f32.mrf.mxu0
      %v404 = vadd.f32 %v281, %v403
      %v405 = vpop.f32.mrf.mxu0
      %406 = vmatprep.mubr.f32.mxu0 0.0
      %407 = vmatmul.mubr.f32.gmra.mxu0 %v161
      %v408 = vpop.f32.mrf.mxu0
      %v409 = vadd.f32 %v281, %v408
      %v410 = vpop.f32.mrf.mxu0
      %411 = vmatprep.mubr.f32.mxu0 0.0
      %412 = vmatmul.mubr.f32.gmra.mxu0 %v162
      %v413 = vpop.f32.mrf.mxu0
      %v414 = vadd.f32 %v281, %v413
      %v415 = vpop.f32.mrf.mxu0
      %416 = vmatprep.mubr.f32.mxu0 0.0
      %417 = vmatmul.mubr.f32.gmra.mxu0 %v163
      %v418 = vpop.f32.mrf.mxu0
      %v419 = vadd.f32 %v281, %v418
      %v420 = vpop.f32.mrf.mxu0
      %421 = vmatprep.mubr.f32.mxu0 0.0
      %422 = vmatmul.mubr.f32.gmra.mxu0 %v164
      %v423 = vpop.f32.mrf.mxu0
      %v424 = vadd.f32 %v281, %v423
      %v425 = vpop.f32.mrf.mxu0
      %426 = vdwg.mxu0
      %vm427 = vcmp.gt.f32.partialorder %v349, 0.0
      %vm428 = vcmp.gt.f32.partialorder %v354, 0.0
      %vm429 = vcmp.gt.f32.partialorder %v359, 0.0
      %vm430 = vcmp.gt.f32.partialorder %v364, 0.0
      %vm431 = vcmp.gt.f32.partialorder %v369, 0.0
      %vm432 = vcmp.gt.f32.partialorder %v374, 0.0
      %vm433 = vcmp.gt.f32.partialorder %v379, 0.0
      %vm434 = vcmp.gt.f32.partialorder %v384, 0.0
      %vm435 = vcmp.gt.f32.partialorder %v389, 0.0
      %vm436 = vcmp.gt.f32.partialorder %v394, 0.0
      %vm437 = vcmp.gt.f32.partialorder %v399, 0.0
      %vm438 = vcmp.gt.f32.partialorder %v404, 0.0
      %vm439 = vcmp.gt.f32.partialorder %v409, 0.0
      %vm440 = vcmp.gt.f32.partialorder %v414, 0.0
      %vm441 = vcmp.gt.f32.partialorder %v419, 0.0
      %vm442 = vcmp.gt.f32.partialorder %v424, 0.0
      %v443 = vmul.f32 %v349, 0.01
      %v444 = vmul.f32 %v354, 0.01
      %v445 = vmul.f32 %v359, 0.01
      %v446 = vmul.f32 %v364, 0.01
      %v447 = vmul.f32 %v369, 0.01
      %v448 = vmul.f32 %v374, 0.01
      %v449 = vmul.f32 %v379, 0.01
      %v450 = vmul.f32 %v384, 0.01
      %v451 = vmul.f32 %v389, 0.01
      %v452 = vmul.f32 %v394, 0.01
      %v453 = vmul.f32 %v399, 0.01
      %v454 = vmul.f32 %v404, 0.01
      %v455 = vmul.f32 %v409, 0.01
      %v456 = vmul.f32 %v414, 0.01
      %v457 = vmul.f32 %v419, 0.01
      %v458 = vmul.f32 %v424, 0.01
      %v459 = vsel %vm427, %v349, %v443
      %v460 = vsel %vm428, %v354, %v444
      %v461 = vsel %vm429, %v359, %v445
      %v462 = vsel %vm430, %v364, %v446
      %v463 = vsel %vm431, %v369, %v447
      %v464 = vsel %vm432, %v374, %v448
      %v465 = vsel %vm433, %v379, %v449
      %v466 = vsel %vm434, %v384, %v450
      %v467 = vsel %vm435, %v389, %v451
      %v468 = vsel %vm436, %v394, %v452
      %v469 = vsel %vm437, %v399, %v453
      %v470 = vsel %vm438, %v404, %v454
      %v471 = vsel %vm439, %v409, %v455
      %v472 = vsel %vm440, %v414, %v456
      %v473 = vsel %vm441, %v419, %v457
      %v474 = vsel %vm442, %v424, %v458
      %v475 = vlaneseq
      %v476 = vshrl.u32 %v475, 7
      %v477 = vsub.s32 1, %v476
      %v478 = vrot.slane %v277, %v477
      %479 = vmatprep.subr.mxu0 0.0
      %480 = vmatpush1.msra.mxu0 %v196
      %481 = vmatprep.subr.mxu0 0.0
      %482 = vmatpush1.msra.mxu0 %v195
      %483 = vmatprep.subr.mxu0 0.0
      %484 = vmatpush1.msra.mxu0 %v194
      %485 = vmatprep.subr.mxu0 0.0
      %486 = vmatpush1.msra.mxu0 %v193
      %487 = vmatprep.subr.mxu0 0.0
      %488 = vmatpush1.msra.mxu0 %v192
      %489 = vmatprep.subr.mxu0 0.0
      %490 = vmatpush1.msra.mxu0 %v191
      %491 = vmatprep.subr.mxu0 0.0
      %492 = vmatpush1.msra.mxu0 %v190
      %493 = vmatprep.subr.mxu0 0.0
      %494 = vmatpush1.msra.mxu0 %v189
      %495 = vmatprep.subr.mxu0 0.0
      %496 = vmatpush1.msra.mxu0 %v188
      %497 = vmatprep.subr.mxu0 0.0
      %498 = vmatpush1.msra.mxu0 %v187
      %499 = vmatprep.subr.mxu0 0.0
      %500 = vmatpush1.msra.mxu0 %v186
      %501 = vmatprep.subr.mxu0 0.0
      %502 = vmatpush1.msra.mxu0 %v185
      %503 = vmatprep.subr.mxu0 0.0
      %504 = vmatpush1.msra.mxu0 %v184
      %505 = vmatprep.subr.mxu0 0.0
      %506 = vmatpush1.msra.mxu0 %v183
      %507 = vmatprep.subr.mxu0 0.0
      %508 = vmatpush1.msra.mxu0 %v182
      %509 = vmatprep.subr.mxu0 0.0
      %510 = vmatpush1.msra.mxu0 %v181
      %511 = vmatprep.subr.mxu0 0.0
      %512 = vmatpush2.msra.mxu0 %v212
      %513 = vmatprep.subr.mxu0 0.0
      %514 = vmatpush2.msra.mxu0 %v211
      %515 = vmatprep.subr.mxu0 0.0
      %516 = vmatpush2.msra.mxu0 %v210
      %517 = vmatprep.subr.mxu0 0.0
      %518 = vmatpush2.msra.mxu0 %v209
      %519 = vmatprep.subr.mxu0 0.0
      %520 = vmatpush2.msra.mxu0 %v208
      %521 = vmatprep.subr.mxu0 0.0
      %522 = vmatpush2.msra.mxu0 %v207
      %523 = vmatprep.subr.mxu0 0.0
      %524 = vmatpush2.msra.mxu0 %v206
      %525 = vmatprep.subr.mxu0 0.0
      %526 = vmatpush2.msra.mxu0 %v205
      %527 = vmatprep.subr.mxu0 0.0
      %528 = vmatpush2.msra.mxu0 %v204
      %529 = vmatprep.subr.mxu0 0.0
      %530 = vmatpush2.msra.mxu0 %v203
      %531 = vmatprep.subr.mxu0 0.0
      %532 = vmatpush2.msra.mxu0 %v202
      %533 = vmatprep.subr.mxu0 0.0
      %534 = vmatpush2.msra.mxu0 %v201
      %535 = vmatprep.subr.mxu0 0.0
      %536 = vmatpush2.msra.mxu0 %v200
      %537 = vmatprep.subr.mxu0 0.0
      %538 = vmatpush2.msra.mxu0 %v199
      %539 = vmatprep.subr.mxu0 0.0
      %540 = vmatpush2.msra.mxu0 %v198
      %541 = vmatprep.subr.mxu0 0.0
      %542 = vmatpush2.msra.mxu0 %v197
      %543 = vmatprep.mubr.f32.mxu0 %v149
      %544 = vmatmul.mubr.f32.gmra.mxu0 %v459
      %v545 = vpop.f32.mrf.mxu0
      %v546 = vadd.f32 %v478, %v545
      %v547 = vpop.f32.mrf.mxu0
      %548 = vmatprep.mubr.f32.mxu0 %v150
      %549 = vmatmul.mubr.f32.gmra.mxu0 %v460
      %v550 = vpop.f32.mrf.mxu0
      %v551 = vadd.f32 %v478, %v550
      %v552 = vpop.f32.mrf.mxu0
      %553 = vmatprep.mubr.f32.mxu0 %v151
      %554 = vmatmul.mubr.f32.gmra.mxu0 %v461
      %v555 = vpop.f32.mrf.mxu0
      %v556 = vadd.f32 %v478, %v555
      %v557 = vpop.f32.mrf.mxu0
      %558 = vmatprep.mubr.f32.mxu0 %v152
      %559 = vmatmul.mubr.f32.gmra.mxu0 %v462
      %v560 = vpop.f32.mrf.mxu0
      %v561 = vadd.f32 %v478, %v560
      %v562 = vpop.f32.mrf.mxu0
      %563 = vmatprep.mubr.f32.mxu0 %v153
      %564 = vmatmul.mubr.f32.gmra.mxu0 %v463
      %v565 = vpop.f32.mrf.mxu0
      %v566 = vadd.f32 %v478, %v565
      %v567 = vpop.f32.mrf.mxu0
      %568 = vmatprep.mubr.f32.mxu0 %v154
      %569 = vmatmul.mubr.f32.gmra.mxu0 %v464
      %v570 = vpop.f32.mrf.mxu0
      %v571 = vadd.f32 %v478, %v570
      %v572 = vpop.f32.mrf.mxu0
      %573 = vmatprep.mubr.f32.mxu0 %v155
      %574 = vmatmul.mubr.f32.gmra.mxu0 %v465
      %v575 = vpop.f32.mrf.mxu0
      %v576 = vadd.f32 %v478, %v575
      %v577 = vpop.f32.mrf.mxu0
      %578 = vmatprep.mubr.f32.mxu0 %v156
      %579 = vmatmul.mubr.f32.gmra.mxu0 %v466
      %v580 = vpop.f32.mrf.mxu0
      %v581 = vadd.f32 %v478, %v580
      %v582 = vpop.f32.mrf.mxu0
      %583 = vmatprep.mubr.f32.mxu0 %v157
      %584 = vmatmul.mubr.f32.gmra.mxu0 %v467
      %v585 = vpop.f32.mrf.mxu0
      %v586 = vadd.f32 %v478, %v585
      %v587 = vpop.f32.mrf.mxu0
      %588 = vmatprep.mubr.f32.mxu0 %v158
      %589 = vmatmul.mubr.f32.gmra.mxu0 %v468
      %v590 = vpop.f32.mrf.mxu0
      %v591 = vadd.f32 %v478, %v590
      %v592 = vpop.f32.mrf.mxu0
      %593 = vmatprep.mubr.f32.mxu0 %v159
      %594 = vmatmul.mubr.f32.gmra.mxu0 %v469
      %v595 = vpop.f32.mrf.mxu0
      %v596 = vadd.f32 %v478, %v595
      %v597 = vpop.f32.mrf.mxu0
      %598 = vmatprep.mubr.f32.mxu0 %v160
      %599 = vmatmul.mubr.f32.gmra.mxu0 %v470
      %v600 = vpop.f32.mrf.mxu0
      %v601 = vadd.f32 %v478, %v600
      %v602 = vpop.f32.mrf.mxu0
      %603 = vmatprep.mubr.f32.mxu0 %v161
      %604 = vmatmul.mubr.f32.gmra.mxu0 %v471
      %v605 = vpop.f32.mrf.mxu0
      %v606 = vadd.f32 %v478, %v605
      %v607 = vpop.f32.mrf.mxu0
      %608 = vmatprep.mubr.f32.mxu0 %v162
      %609 = vmatmul.mubr.f32.gmra.mxu0 %v472
      %v610 = vpop.f32.mrf.mxu0
      %v611 = vadd.f32 %v478, %v610
      %v612 = vpop.f32.mrf.mxu0
      %613 = vmatprep.mubr.f32.mxu0 %v163
      %614 = vmatmul.mubr.f32.gmra.mxu0 %v473
      %v615 = vpop.f32.mrf.mxu0
      %v616 = vadd.f32 %v478, %v615
      %v617 = vpop.f32.mrf.mxu0
      %618 = vmatprep.mubr.f32.mxu0 %v164
      %619 = vmatmul.mubr.f32.gmra.mxu0 %v474
      %v620 = vpop.f32.mrf.mxu0
      %v621 = vadd.f32 %v478, %v620
      %v622 = vpop.f32.mrf.mxu0
      %623 = vdwg.mxu0
      %v624 = vtanh.pop %v546
      %v625 = vtanh.pop %v551
      %v626 = vtanh.pop %v556
      %v627 = vtanh.pop %v561
      %v628 = vtanh.pop %v566
      %v629 = vtanh.pop %v571
      %v630 = vtanh.pop %v576
      %v631 = vtanh.pop %v581
      %v632 = vtanh.pop %v586
      %v633 = vtanh.pop %v591
      %v634 = vtanh.pop %v596
      %v635 = vtanh.pop %v601
      %v636 = vtanh.pop %v606
      %v637 = vtanh.pop %v611
      %v638 = vtanh.pop %v616
      %v639 = vtanh.pop %v621
      %640 = vmatprep.subr.mxu0 0.0
      %641 = vmatpush1.msra.mxu0 %v260
      %642 = vmatprep.subr.mxu0 0.0
      %643 = vmatpush1.msra.mxu0 %v259
      %644 = vmatprep.subr.mxu0 0.0
      %645 = vmatpush1.msra.mxu0 %v258
      %646 = vmatprep.subr.mxu0 0.0
      %647 = vmatpush1.msra.mxu0 %v257
      %648 = vmatprep.subr.mxu0 0.0
      %649 = vmatpush1.msra.mxu0 %v256
      %650 = vmatprep.subr.mxu0 0.0
      %651 = vmatpush1.msra.mxu0 %v255
      %652 = vmatprep.subr.mxu0 0.0
      %653 = vmatpush1.msra.mxu0 %v254
      %654 = vmatprep.subr.mxu0 0.0
      %655 = vmatpush1.msra.mxu0 %v253
      %656 = vmatprep.subr.mxu0 0.0
      %657 = vmatpush1.msra.mxu0 %v252
      %658 = vmatprep.subr.mxu0 0.0
      %659 = vmatpush1.msra.mxu0 %v251
      %660 = vmatprep.subr.mxu0 0.0
      %661 = vmatpush1.msra.mxu0 %v250
      %662 = vmatprep.subr.mxu0 0.0
      %663 = vmatpush1.msra.mxu0 %v249
      %664 = vmatprep.subr.mxu0 0.0
      %665 = vmatpush1.msra.mxu0 %v248
      %666 = vmatprep.subr.mxu0 0.0
      %667 = vmatpush1.msra.mxu0 %v247
      %668 = vmatprep.subr.mxu0 0.0
      %669 = vmatpush1.msra.mxu0 %v246
      %670 = vmatprep.subr.mxu0 0.0
      %671 = vmatpush1.msra.mxu0 %v245
      %672 = vmatprep.subr.mxu0 0.0
      %673 = vmatpush2.msra.mxu0 0.0
      %674 = vmatprep.subr.mxu0 0.0
      %675 = vmatpush2.msra.mxu0 0.0
      %676 = vmatprep.subr.mxu0 0.0
      %677 = vmatpush2.msra.mxu0 0.0
      %678 = vmatprep.subr.mxu0 0.0
      %679 = vmatpush2.msra.mxu0 0.0
      %680 = vmatprep.subr.mxu0 0.0
      %681 = vmatpush2.msra.mxu0 0.0
      %682 = vmatprep.subr.mxu0 0.0
      %683 = vmatpush2.msra.mxu0 0.0
      %684 = vmatprep.subr.mxu0 0.0
      %685 = vmatpush2.msra.mxu0 0.0
      %686 = vmatprep.subr.mxu0 0.0
      %687 = vmatpush2.msra.mxu0 0.0
      %688 = vmatprep.subr.mxu0 0.0
      %689 = vmatpush2.msra.mxu0 0.0
      %690 = vmatprep.subr.mxu0 0.0
      %691 = vmatpush2.msra.mxu0 0.0
      %692 = vmatprep.subr.mxu0 0.0
      %693 = vmatpush2.msra.mxu0 0.0
      %694 = vmatprep.subr.mxu0 0.0
      %695 = vmatpush2.msra.mxu0 0.0
      %696 = vmatprep.subr.mxu0 0.0
      %697 = vmatpush2.msra.mxu0 0.0
      %698 = vmatprep.subr.mxu0 0.0
      %699 = vmatpush2.msra.mxu0 0.0
      %700 = vmatprep.subr.mxu0 0.0
      %701 = vmatpush2.msra.mxu0 0.0
      %702 = vmatprep.subr.mxu0 0.0
      %703 = vmatpush2.msra.mxu0 0.0
      %704 = vmatprep.mubr.f32.mxu0 0.0
      %705 = vmatmul.mubr.f32.gmra.mxu0 %v624
      %v706 = vpop.f32.mrf.mxu0
      %v707 = vadd.f32 0.0, %v706
      %v708 = vpop.f32.mrf.mxu0
      %709 = vmatprep.mubr.f32.mxu0 0.0
      %710 = vmatmul.mubr.f32.gmra.mxu0 %v625
      %v711 = vpop.f32.mrf.mxu0
      %v712 = vadd.f32 0.0, %v711
      %v713 = vpop.f32.mrf.mxu0
      %714 = vmatprep.mubr.f32.mxu0 0.0
      %715 = vmatmul.mubr.f32.gmra.mxu0 %v626
      %v716 = vpop.f32.mrf.mxu0
      %v717 = vadd.f32 0.0, %v716
      %v718 = vpop.f32.mrf.mxu0
      %719 = vmatprep.mubr.f32.mxu0 0.0
      %720 = vmatmul.mubr.f32.gmra.mxu0 %v627
      %v721 = vpop.f32.mrf.mxu0
      %v722 = vadd.f32 0.0, %v721
      %v723 = vpop.f32.mrf.mxu0
      %724 = vmatprep.mubr.f32.mxu0 0.0
      %725 = vmatmul.mubr.f32.gmra.mxu0 %v628
      %v726 = vpop.f32.mrf.mxu0
      %v727 = vadd.f32 0.0, %v726
      %v728 = vpop.f32.mrf.mxu0
      %729 = vmatprep.mubr.f32.mxu0 0.0
      %730 = vmatmul.mubr.f32.gmra.mxu0 %v629
      %v731 = vpop.f32.mrf.mxu0
      %v732 = vadd.f32 0.0, %v731
      %v733 = vpop.f32.mrf.mxu0
      %734 = vmatprep.mubr.f32.mxu0 0.0
      %735 = vmatmul.mubr.f32.gmra.mxu0 %v630
      %v736 = vpop.f32.mrf.mxu0
      %v737 = vadd.f32 0.0, %v736
      %v738 = vpop.f32.mrf.mxu0
      %739 = vmatprep.mubr.f32.mxu0 0.0
      %740 = vmatmul.mubr.f32.gmra.mxu0 %v631
      %v741 = vpop.f32.mrf.mxu0
      %v742 = vadd.f32 0.0, %v741
      %v743 = vpop.f32.mrf.mxu0
      %744 = vmatprep.mubr.f32.mxu0 0.0
      %745 = vmatmul.mubr.f32.gmra.mxu0 %v632
      %v746 = vpop.f32.mrf.mxu0
      %v747 = vadd.f32 0.0, %v746
      %v748 = vpop.f32.mrf.mxu0
      %749 = vmatprep.mubr.f32.mxu0 0.0
      %750 = vmatmul.mubr.f32.gmra.mxu0 %v633
      %v751 = vpop.f32.mrf.mxu0
      %v752 = vadd.f32 0.0, %v751
      %v753 = vpop.f32.mrf.mxu0
      %754 = vmatprep.mubr.f32.mxu0 0.0
      %755 = vmatmul.mubr.f32.gmra.mxu0 %v634
      %v756 = vpop.f32.mrf.mxu0
      %v757 = vadd.f32 0.0, %v756
      %v758 = vpop.f32.mrf.mxu0
      %759 = vmatprep.mubr.f32.mxu0 0.0
      %760 = vmatmul.mubr.f32.gmra.mxu0 %v635
      %v761 = vpop.f32.mrf.mxu0
      %v762 = vadd.f32 0.0, %v761
      %v763 = vpop.f32.mrf.mxu0
      %764 = vmatprep.mubr.f32.mxu0 0.0
      %765 = vmatmul.mubr.f32.gmra.mxu0 %v636
      %v766 = vpop.f32.mrf.mxu0
      %v767 = vadd.f32 0.0, %v766
      %v768 = vpop.f32.mrf.mxu0
      %769 = vmatprep.mubr.f32.mxu0 0.0
      %770 = vmatmul.mubr.f32.gmra.mxu0 %v637
      %v771 = vpop.f32.mrf.mxu0
      %v772 = vadd.f32 0.0, %v771
      %v773 = vpop.f32.mrf.mxu0
      %774 = vmatprep.mubr.f32.mxu0 0.0
      %775 = vmatmul.mubr.f32.gmra.mxu0 %v638
      %v776 = vpop.f32.mrf.mxu0
      %v777 = vadd.f32 0.0, %v776
      %v778 = vpop.f32.mrf.mxu0
      %779 = vmatprep.mubr.f32.mxu0 0.0
      %780 = vmatmul.mubr.f32.gmra.mxu0 %v639
      %v781 = vpop.f32.mrf.mxu0
      %v782 = vadd.f32 0.0, %v781
      %v783 = vpop.f32.mrf.mxu0
      %784 = vdwg.mxu0
      %v785 = vmul.f32 %v624, %v624
      %v786 = vmul.f32 %v625, %v625
      %v787 = vmul.f32 %v626, %v626
      %v788 = vmul.f32 %v627, %v627
      %v789 = vmul.f32 %v628, %v628
      %v790 = vmul.f32 %v629, %v629
      %v791 = vmul.f32 %v630, %v630
      %v792 = vmul.f32 %v631, %v631
      %v793 = vmul.f32 %v632, %v632
      %v794 = vmul.f32 %v633, %v633
      %v795 = vmul.f32 %v634, %v634
      %v796 = vmul.f32 %v635, %v635
      %v797 = vmul.f32 %v636, %v636
      %v798 = vmul.f32 %v637, %v637
      %v799 = vmul.f32 %v638, %v638
      %v800 = vmul.f32 %v639, %v639
      %801 = vadd.xlane.f32.xlu0 %v785
      %v802 = vpop.xlane.xlu0 %801
      %803 = vadd.xlane.f32.xlu0 %v786
      %v804 = vpop.xlane.xlu0 %803
      %805 = vadd.xlane.f32.xlu0 %v787
      %v806 = vpop.xlane.xlu0 %805
      %807 = vadd.xlane.f32.xlu0 %v788
      %v808 = vpop.xlane.xlu0 %807
      %809 = vadd.xlane.f32.xlu0 %v789
      %v810 = vpop.xlane.xlu0 %809
      %811 = vadd.xlane.f32.xlu0 %v790
      %v812 = vpop.xlane.xlu0 %811
      %813 = vadd.xlane.f32.xlu0 %v791
      %v814 = vpop.xlane.xlu0 %813
      %815 = vadd.xlane.f32.xlu0 %v792
      %v816 = vpop.xlane.xlu0 %815
      %817 = vadd.xlane.f32.xlu0 %v793
      %v818 = vpop.xlane.xlu0 %817
      %819 = vadd.xlane.f32.xlu0 %v794
      %v820 = vpop.xlane.xlu0 %819
      %821 = vadd.xlane.f32.xlu0 %v795
      %v822 = vpop.xlane.xlu0 %821
      %823 = vadd.xlane.f32.xlu0 %v796
      %v824 = vpop.xlane.xlu0 %823
      %825 = vadd.xlane.f32.xlu0 %v797
      %v826 = vpop.xlane.xlu0 %825
      %827 = vadd.xlane.f32.xlu0 %v798
      %v828 = vpop.xlane.xlu0 %827
      %829 = vadd.xlane.f32.xlu0 %v799
      %v830 = vpop.xlane.xlu0 %829
      %831 = vadd.xlane.f32.xlu0 %v800
      %v832 = vpop.xlane.xlu0 %831
      %v833 = vlaneseq
      %v834 = vshrl.u32 %v833, 7
      %v835 = vsub.s32 3, %v834
      %v836 = vrot.slane %v277, %v835
      %v837 = vadd.f32 %v802, %v836
      %v838 = vadd.f32 %v804, %v836
      %v839 = vadd.f32 %v806, %v836
      %v840 = vadd.f32 %v808, %v836
      %v841 = vadd.f32 %v810, %v836
      %v842 = vadd.f32 %v812, %v836
      %v843 = vadd.f32 %v814, %v836
      %v844 = vadd.f32 %v816, %v836
      %v845 = vadd.f32 %v818, %v836
      %v846 = vadd.f32 %v820, %v836
      %v847 = vadd.f32 %v822, %v836
      %v848 = vadd.f32 %v824, %v836
      %v849 = vadd.f32 %v826, %v836
      %v850 = vadd.f32 %v828, %v836
      %v851 = vadd.f32 %v830, %v836
      %v852 = vadd.f32 %v832, %v836
      %v853 = vmul.f32 %v707, 2.0
      %v854 = vmul.f32 %v712, 2.0
      %v855 = vmul.f32 %v717, 2.0
      %v856 = vmul.f32 %v722, 2.0
      %v857 = vmul.f32 %v727, 2.0
      %v858 = vmul.f32 %v732, 2.0
      %v859 = vmul.f32 %v737, 2.0
      %v860 = vmul.f32 %v742, 2.0
      %v861 = vmul.f32 %v747, 2.0
      %v862 = vmul.f32 %v752, 2.0
      %v863 = vmul.f32 %v757, 2.0
      %v864 = vmul.f32 %v762, 2.0
      %v865 = vmul.f32 %v767, 2.0
      %v866 = vmul.f32 %v772, 2.0
      %v867 = vmul.f32 %v777, 2.0
      %v868 = vmul.f32 %v782, 2.0
      %v869 = vsub.f32 %v837, %v853
      %v870 = vsub.f32 %v838, %v854
      %v871 = vsub.f32 %v839, %v855
      %v872 = vsub.f32 %v840, %v856
      %v873 = vsub.f32 %v841, %v857
      %v874 = vsub.f32 %v842, %v858
      %v875 = vsub.f32 %v843, %v859
      %v876 = vsub.f32 %v844, %v860
      %v877 = vsub.f32 %v845, %v861
      %v878 = vsub.f32 %v846, %v862
      %v879 = vsub.f32 %v847, %v863
      %v880 = vsub.f32 %v848, %v864
      %v881 = vsub.f32 %v849, %v865
      %v882 = vsub.f32 %v850, %v866
      %v883 = vsub.f32 %v851, %v867
      %v884 = vsub.f32 %v852, %v868
      %v885 = vmax.f32 %v869, 0.0
      %v886 = vmax.f32 %v870, 0.0
      %v887 = vmax.f32 %v871, 0.0
      %v888 = vmax.f32 %v872, 0.0
      %v889 = vmax.f32 %v873, 0.0
      %v890 = vmax.f32 %v874, 0.0
      %v891 = vmax.f32 %v875, 0.0
      %v892 = vmax.f32 %v876, 0.0
      %v893 = vmax.f32 %v877, 0.0
      %v894 = vmax.f32 %v878, 0.0
      %v895 = vmax.f32 %v879, 0.0
      %v896 = vmax.f32 %v880, 0.0
      %v897 = vmax.f32 %v881, 0.0
      %v898 = vmax.f32 %v882, 0.0
      %v899 = vmax.f32 %v883, 0.0
      %v900 = vmax.f32 %v884, 0.0
      %901 = vmin.xlane.f32.xlu0 %v885
      %v902 = vpop.xlane.xlu0 %901
      %903 = vmin.xlane.f32.xlu0 %v886
      %v904 = vpop.xlane.xlu0 %903
      %905 = vmin.xlane.f32.xlu0 %v887
      %v906 = vpop.xlane.xlu0 %905
      %907 = vmin.xlane.f32.xlu0 %v888
      %v908 = vpop.xlane.xlu0 %907
      %909 = vmin.xlane.f32.xlu0 %v889
      %v910 = vpop.xlane.xlu0 %909
      %911 = vmin.xlane.f32.xlu0 %v890
      %v912 = vpop.xlane.xlu0 %911
      %913 = vmin.xlane.f32.xlu0 %v891
      %v914 = vpop.xlane.xlu0 %913
      %915 = vmin.xlane.f32.xlu0 %v892
      %v916 = vpop.xlane.xlu0 %915
      %917 = vmin.xlane.f32.xlu0 %v893
      %v918 = vpop.xlane.xlu0 %917
      %919 = vmin.xlane.f32.xlu0 %v894
      %v920 = vpop.xlane.xlu0 %919
      %921 = vmin.xlane.f32.xlu0 %v895
      %v922 = vpop.xlane.xlu0 %921
      %923 = vmin.xlane.f32.xlu0 %v896
      %v924 = vpop.xlane.xlu0 %923
      %925 = vmin.xlane.f32.xlu0 %v897
      %v926 = vpop.xlane.xlu0 %925
      %927 = vmin.xlane.f32.xlu0 %v898
      %v928 = vpop.xlane.xlu0 %927
      %929 = vmin.xlane.f32.xlu0 %v899
      %v930 = vpop.xlane.xlu0 %929
      %931 = vmin.xlane.f32.xlu0 %v900
      %v932 = vpop.xlane.xlu0 %931
      %v933 = vlaneseq
      %v934 = vand.u32 %v933, 127
      %vm935 = vcmp.le.f32.partialorder %v885, %v902
      %vm936 = vcmp.le.f32.partialorder %v886, %v904
      %vm937 = vcmp.le.f32.partialorder %v887, %v906
      %vm938 = vcmp.le.f32.partialorder %v888, %v908
      %vm939 = vcmp.le.f32.partialorder %v889, %v910
      %vm940 = vcmp.le.f32.partialorder %v890, %v912
      %vm941 = vcmp.le.f32.partialorder %v891, %v914
      %vm942 = vcmp.le.f32.partialorder %v892, %v916
      %vm943 = vcmp.le.f32.partialorder %v893, %v918
      %vm944 = vcmp.le.f32.partialorder %v894, %v920
      %vm945 = vcmp.le.f32.partialorder %v895, %v922
      %vm946 = vcmp.le.f32.partialorder %v896, %v924
      %vm947 = vcmp.le.f32.partialorder %v897, %v926
      %vm948 = vcmp.le.f32.partialorder %v898, %v928
      %vm949 = vcmp.le.f32.partialorder %v899, %v930
      %vm950 = vcmp.le.f32.partialorder %v900, %v932
      %v951 = vsel %vm935, %v934, 128
      %v952 = vsel %vm936, %v934, 128
      %v953 = vsel %vm937, %v934, 128
      %v954 = vsel %vm938, %v934, 128
      %v955 = vsel %vm939, %v934, 128
      %v956 = vsel %vm940, %v934, 128
      %v957 = vsel %vm941, %v934, 128
      %v958 = vsel %vm942, %v934, 128
      %v959 = vsel %vm943, %v934, 128
      %v960 = vsel %vm944, %v934, 128
      %v961 = vsel %vm945, %v934, 128
      %v962 = vsel %vm946, %v934, 128
      %v963 = vsel %vm947, %v934, 128
      %v964 = vsel %vm948, %v934, 128
      %v965 = vsel %vm949, %v934, 128
      %v966 = vsel %vm950, %v934, 128
      %v967 = vand.u32 %v951, 65535
      %v968 = vshra.s32 %v951, 16
      %v969 = vcvt.s32.f32 %v967
      %v970 = vcvt.s32.f32 %v968
      %971 = vmin.xlane.f32.xlu0 %v970
      %v972 = vpop.xlane.xlu0 %971
      %vm973 = vcmp.eq.f32.partialorder %v970, %v972
      %v974 = vsel %vm973, %v969, inf
      %975 = vmin.xlane.f32.xlu0 %v974
      %v976 = vpop.xlane.xlu0 %975
      %v977 = vcvt.f32.s32 %v976
      %v978 = vcvt.f32.s32 %v972
      %v979 = vshll.u32 %v978, 16
      %v980 = vadd.s32 %v979, %v977
      %v981 = vand.u32 %v952, 65535
      %v982 = vshra.s32 %v952, 16
      %v983 = vcvt.s32.f32 %v981
      %v984 = vcvt.s32.f32 %v982
      %985 = vmin.xlane.f32.xlu0 %v984
      %v986 = vpop.xlane.xlu0 %985
      %vm987 = vcmp.eq.f32.partialorder %v984, %v986
      %v988 = vsel %vm987, %v983, inf
      %989 = vmin.xlane.f32.xlu0 %v988
      %v990 = vpop.xlane.xlu0 %989
      %v991 = vcvt.f32.s32 %v990
      %v992 = vcvt.f32.s32 %v986
      %v993 = vshll.u32 %v992, 16
      %v994 = vadd.s32 %v993, %v991
      %v995 = vand.u32 %v953, 65535
      %v996 = vshra.s32 %v953, 16
      %v997 = vcvt.s32.f32 %v995
      %v998 = vcvt.s32.f32 %v996
      %999 = vmin.xlane.f32.xlu0 %v998
      %v1000 = vpop.xlane.xlu0 %999
      %vm1001 = vcmp.eq.f32.partialorder %v998, %v1000
      %v1002 = vsel %vm1001, %v997, inf
      %1003 = vmin.xlane.f32.xlu0 %v1002
      %v1004 = vpop.xlane.xlu0 %1003
      %v1005 = vcvt.f32.s32 %v1004
      %v1006 = vcvt.f32.s32 %v1000
      %v1007 = vshll.u32 %v1006, 16
      %v1008 = vadd.s32 %v1007, %v1005
      %v1009 = vand.u32 %v954, 65535
      %v1010 = vshra.s32 %v954, 16
      %v1011 = vcvt.s32.f32 %v1009
      %v1012 = vcvt.s32.f32 %v1010
      %1013 = vmin.xlane.f32.xlu0 %v1012
      %v1014 = vpop.xlane.xlu0 %1013
      %vm1015 = vcmp.eq.f32.partialorder %v1012, %v1014
      %v1016 = vsel %vm1015, %v1011, inf
      %1017 = vmin.xlane.f32.xlu0 %v1016
      %v1018 = vpop.xlane.xlu0 %1017
      %v1019 = vcvt.f32.s32 %v1018
      %v1020 = vcvt.f32.s32 %v1014
      %v1021 = vshll.u32 %v1020, 16
      %v1022 = vadd.s32 %v1021, %v1019
      %v1023 = vand.u32 %v955, 65535
      %v1024 = vshra.s32 %v955, 16
      %v1025 = vcvt.s32.f32 %v1023
      %v1026 = vcvt.s32.f32 %v1024
      %1027 = vmin.xlane.f32.xlu0 %v1026
      %v1028 = vpop.xlane.xlu0 %1027
      %vm1029 = vcmp.eq.f32.partialorder %v1026, %v1028
      %v1030 = vsel %vm1029, %v1025, inf
      %1031 = vmin.xlane.f32.xlu0 %v1030
      %v1032 = vpop.xlane.xlu0 %1031
      %v1033 = vcvt.f32.s32 %v1032
      %v1034 = vcvt.f32.s32 %v1028
      %v1035 = vshll.u32 %v1034, 16
      %v1036 = vadd.s32 %v1035, %v1033
      %v1037 = vand.u32 %v956, 65535
      %v1038 = vshra.s32 %v956, 16
      %v1039 = vcvt.s32.f32 %v1037
      %v1040 = vcvt.s32.f32 %v1038
      %1041 = vmin.xlane.f32.xlu0 %v1040
      %v1042 = vpop.xlane.xlu0 %1041
      %vm1043 = vcmp.eq.f32.partialorder %v1040, %v1042
      %v1044 = vsel %vm1043, %v1039, inf
      %1045 = vmin.xlane.f32.xlu0 %v1044
      %v1046 = vpop.xlane.xlu0 %1045
      %v1047 = vcvt.f32.s32 %v1046
      %v1048 = vcvt.f32.s32 %v1042
      %v1049 = vshll.u32 %v1048, 16
      %v1050 = vadd.s32 %v1049, %v1047
      %v1051 = vand.u32 %v957, 65535
      %v1052 = vshra.s32 %v957, 16
      %v1053 = vcvt.s32.f32 %v1051
      %v1054 = vcvt.s32.f32 %v1052
      %1055 = vmin.xlane.f32.xlu0 %v1054
      %v1056 = vpop.xlane.xlu0 %1055
      %vm1057 = vcmp.eq.f32.partialorder %v1054, %v1056
      %v1058 = vsel %vm1057, %v1053, inf
      %1059 = vmin.xlane.f32.xlu0 %v1058
      %v1060 = vpop.xlane.xlu0 %1059
      %v1061 = vcvt.f32.s32 %v1060
      %v1062 = vcvt.f32.s32 %v1056
      %v1063 = vshll.u32 %v1062, 16
      %v1064 = vadd.s32 %v1063, %v1061
      %v1065 = vand.u32 %v958, 65535
      %v1066 = vshra.s32 %v958, 16
      %v1067 = vcvt.s32.f32 %v1065
      %v1068 = vcvt.s32.f32 %v1066
      %1069 = vmin.xlane.f32.xlu0 %v1068
      %v1070 = vpop.xlane.xlu0 %1069
      %vm1071 = vcmp.eq.f32.partialorder %v1068, %v1070
      %v1072 = vsel %vm1071, %v1067, inf
      %1073 = vmin.xlane.f32.xlu0 %v1072
      %v1074 = vpop.xlane.xlu0 %1073
      %v1075 = vcvt.f32.s32 %v1074
      %v1076 = vcvt.f32.s32 %v1070
      %v1077 = vshll.u32 %v1076, 16
      %v1078 = vadd.s32 %v1077, %v1075
      %v1079 = vand.u32 %v959, 65535
      %v1080 = vshra.s32 %v959, 16
      %v1081 = vcvt.s32.f32 %v1079
      %v1082 = vcvt.s32.f32 %v1080
      %1083 = vmin.xlane.f32.xlu0 %v1082
      %v1084 = vpop.xlane.xlu0 %1083
      %vm1085 = vcmp.eq.f32.partialorder %v1082, %v1084
      %v1086 = vsel %vm1085, %v1081, inf
      %1087 = vmin.xlane.f32.xlu0 %v1086
      %v1088 = vpop.xlane.xlu0 %1087
      %v1089 = vcvt.f32.s32 %v1088
      %v1090 = vcvt.f32.s32 %v1084
      %v1091 = vshll.u32 %v1090, 16
      %v1092 = vadd.s32 %v1091, %v1089
      %v1093 = vand.u32 %v960, 65535
      %v1094 = vshra.s32 %v960, 16
      %v1095 = vcvt.s32.f32 %v1093
      %v1096 = vcvt.s32.f32 %v1094
      %1097 = vmin.xlane.f32.xlu0 %v1096
      %v1098 = vpop.xlane.xlu0 %1097
      %vm1099 = vcmp.eq.f32.partialorder %v1096, %v1098
      %v1100 = vsel %vm1099, %v1095, inf
      %1101 = vmin.xlane.f32.xlu0 %v1100
      %v1102 = vpop.xlane.xlu0 %1101
      %v1103 = vcvt.f32.s32 %v1102
      %v1104 = vcvt.f32.s32 %v1098
      %v1105 = vshll.u32 %v1104, 16
      %v1106 = vadd.s32 %v1105, %v1103
      %v1107 = vand.u32 %v961, 65535
      %v1108 = vshra.s32 %v961, 16
      %v1109 = vcvt.s32.f32 %v1107
      %v1110 = vcvt.s32.f32 %v1108
      %1111 = vmin.xlane.f32.xlu0 %v1110
      %v1112 = vpop.xlane.xlu0 %1111
      %vm1113 = vcmp.eq.f32.partialorder %v1110, %v1112
      %v1114 = vsel %vm1113, %v1109, inf
      %1115 = vmin.xlane.f32.xlu0 %v1114
      %v1116 = vpop.xlane.xlu0 %1115
      %v1117 = vcvt.f32.s32 %v1116
      %v1118 = vcvt.f32.s32 %v1112
      %v1119 = vshll.u32 %v1118, 16
      %v1120 = vadd.s32 %v1119, %v1117
      %v1121 = vand.u32 %v962, 65535
      %v1122 = vshra.s32 %v962, 16
      %v1123 = vcvt.s32.f32 %v1121
      %v1124 = vcvt.s32.f32 %v1122
      %1125 = vmin.xlane.f32.xlu0 %v1124
      %v1126 = vpop.xlane.xlu0 %1125
      %vm1127 = vcmp.eq.f32.partialorder %v1124, %v1126
      %v1128 = vsel %vm1127, %v1123, inf
      %1129 = vmin.xlane.f32.xlu0 %v1128
      %v1130 = vpop.xlane.xlu0 %1129
      %v1131 = vcvt.f32.s32 %v1130
      %v1132 = vcvt.f32.s32 %v1126
      %v1133 = vshll.u32 %v1132, 16
      %v1134 = vadd.s32 %v1133, %v1131
      %v1135 = vand.u32 %v963, 65535
      %v1136 = vshra.s32 %v963, 16
      %v1137 = vcvt.s32.f32 %v1135
      %v1138 = vcvt.s32.f32 %v1136
      %1139 = vmin.xlane.f32.xlu0 %v1138
      %v1140 = vpop.xlane.xlu0 %1139
      %vm1141 = vcmp.eq.f32.partialorder %v1138, %v1140
      %v1142 = vsel %vm1141, %v1137, inf
      %1143 = vmin.xlane.f32.xlu0 %v1142
      %v1144 = vpop.xlane.xlu0 %1143
      %v1145 = vcvt.f32.s32 %v1144
      %v1146 = vcvt.f32.s32 %v1140
      %v1147 = vshll.u32 %v1146, 16
      %v1148 = vadd.s32 %v1147, %v1145
      %v1149 = vand.u32 %v964, 65535
      %v1150 = vshra.s32 %v964, 16
      %v1151 = vcvt.s32.f32 %v1149
      %v1152 = vcvt.s32.f32 %v1150
      %1153 = vmin.xlane.f32.xlu0 %v1152
      %v1154 = vpop.xlane.xlu0 %1153
      %vm1155 = vcmp.eq.f32.partialorder %v1152, %v1154
      %v1156 = vsel %vm1155, %v1151, inf
      %1157 = vmin.xlane.f32.xlu0 %v1156
      %v1158 = vpop.xlane.xlu0 %1157
      %v1159 = vcvt.f32.s32 %v1158
      %v1160 = vcvt.f32.s32 %v1154
      %v1161 = vshll.u32 %v1160, 16
      %v1162 = vadd.s32 %v1161, %v1159
      %v1163 = vand.u32 %v965, 65535
      %v1164 = vshra.s32 %v965, 16
      %v1165 = vcvt.s32.f32 %v1163
      %v1166 = vcvt.s32.f32 %v1164
      %1167 = vmin.xlane.f32.xlu0 %v1166
      %v1168 = vpop.xlane.xlu0 %1167
      %vm1169 = vcmp.eq.f32.partialorder %v1166, %v1168
      %v1170 = vsel %vm1169, %v1165, inf
      %1171 = vmin.xlane.f32.xlu0 %v1170
      %v1172 = vpop.xlane.xlu0 %1171
      %v1173 = vcvt.f32.s32 %v1172
      %v1174 = vcvt.f32.s32 %v1168
      %v1175 = vshll.u32 %v1174, 16
      %v1176 = vadd.s32 %v1175, %v1173
      %v1177 = vand.u32 %v966, 65535
      %v1178 = vshra.s32 %v966, 16
      %v1179 = vcvt.s32.f32 %v1177
      %v1180 = vcvt.s32.f32 %v1178
      %1181 = vmin.xlane.f32.xlu0 %v1180
      %v1182 = vpop.xlane.xlu0 %1181
      %vm1183 = vcmp.eq.f32.partialorder %v1180, %v1182
      %v1184 = vsel %vm1183, %v1179, inf
      %1185 = vmin.xlane.f32.xlu0 %v1184
      %v1186 = vpop.xlane.xlu0 %1185
      %v1187 = vcvt.f32.s32 %v1186
      %v1188 = vcvt.f32.s32 %v1182
      %v1189 = vshll.u32 %v1188, 16
      %v1190 = vadd.s32 %v1189, %v1187
      %vm1191 = vcmp.eq.s32.totalorder %v934, %v980
      %vm1192 = vcmp.eq.s32.totalorder %v934, %v994
      %vm1193 = vcmp.eq.s32.totalorder %v934, %v1008
      %vm1194 = vcmp.eq.s32.totalorder %v934, %v1022
      %vm1195 = vcmp.eq.s32.totalorder %v934, %v1036
      %vm1196 = vcmp.eq.s32.totalorder %v934, %v1050
      %vm1197 = vcmp.eq.s32.totalorder %v934, %v1064
      %vm1198 = vcmp.eq.s32.totalorder %v934, %v1078
      %vm1199 = vcmp.eq.s32.totalorder %v934, %v1092
      %vm1200 = vcmp.eq.s32.totalorder %v934, %v1106
      %vm1201 = vcmp.eq.s32.totalorder %v934, %v1120
      %vm1202 = vcmp.eq.s32.totalorder %v934, %v1134
      %vm1203 = vcmp.eq.s32.totalorder %v934, %v1148
      %vm1204 = vcmp.eq.s32.totalorder %v934, %v1162
      %vm1205 = vcmp.eq.s32.totalorder %v934, %v1176
      %vm1206 = vcmp.eq.s32.totalorder %v934, %v1190
      %v1207 = vsel %vm1191, 1, 0
      %v1208 = vsel %vm1192, 1, 0
      %v1209 = vsel %vm1193, 1, 0
      %v1210 = vsel %vm1194, 1, 0
      %v1211 = vsel %vm1195, 1, 0
      %v1212 = vsel %vm1196, 1, 0
      %v1213 = vsel %vm1197, 1, 0
      %v1214 = vsel %vm1198, 1, 0
      %v1215 = vsel %vm1199, 1, 0
      %v1216 = vsel %vm1200, 1, 0
      %v1217 = vsel %vm1201, 1, 0
      %v1218 = vsel %vm1202, 1, 0
      %v1219 = vsel %vm1203, 1, 0
      %v1220 = vsel %vm1204, 1, 0
      %v1221 = vsel %vm1205, 1, 0
      %v1222 = vsel %vm1206, 1, 0
      %v1223 = vcvt.s32.f32 %v1207
      %v1224 = vcvt.s32.f32 %v1208
      %v1225 = vcvt.s32.f32 %v1209
      %v1226 = vcvt.s32.f32 %v1210
      %v1227 = vcvt.s32.f32 %v1211
      %v1228 = vcvt.s32.f32 %v1212
      %v1229 = vcvt.s32.f32 %v1213
      %v1230 = vcvt.s32.f32 %v1214
      %v1231 = vcvt.s32.f32 %v1215
      %v1232 = vcvt.s32.f32 %v1216
      %v1233 = vcvt.s32.f32 %v1217
      %v1234 = vcvt.s32.f32 %v1218
      %v1235 = vcvt.s32.f32 %v1219
      %v1236 = vcvt.s32.f32 %v1220
      %v1237 = vcvt.s32.f32 %v1221
      %v1238 = vcvt.s32.f32 %v1222
      %1239 = vmatprep.subr.mxu0 0.0
      %1240 = vmatpush1.msra.mxu0 %v276
      %1241 = vmatprep.subr.mxu0 0.0
      %1242 = vmatpush1.msra.mxu0 %v275
      %1243 = vmatprep.subr.mxu0 0.0
      %1244 = vmatpush1.msra.mxu0 %v274
      %1245 = vmatprep.subr.mxu0 0.0
      %1246 = vmatpush1.msra.mxu0 %v273
      %1247 = vmatprep.subr.mxu0 0.0
      %1248 = vmatpush1.msra.mxu0 %v272
      %1249 = vmatprep.subr.mxu0 0.0
      %1250 = vmatpush1.msra.mxu0 %v271
      %1251 = vmatprep.subr.mxu0 0.0
      %1252 = vmatpush1.msra.mxu0 %v270
      %1253 = vmatprep.subr.mxu0 0.0
      %1254 = vmatpush1.msra.mxu0 %v269
      %1255 = vmatprep.subr.mxu0 0.0
      %1256 = vmatpush1.msra.mxu0 %v268
      %1257 = vmatprep.subr.mxu0 0.0
      %1258 = vmatpush1.msra.mxu0 %v267
      %1259 = vmatprep.subr.mxu0 0.0
      %1260 = vmatpush1.msra.mxu0 %v266
      %1261 = vmatprep.subr.mxu0 0.0
      %1262 = vmatpush1.msra.mxu0 %v265
      %1263 = vmatprep.subr.mxu0 0.0
      %1264 = vmatpush1.msra.mxu0 %v264
      %1265 = vmatprep.subr.mxu0 0.0
      %1266 = vmatpush1.msra.mxu0 %v263
      %1267 = vmatprep.subr.mxu0 0.0
      %1268 = vmatpush1.msra.mxu0 %v262
      %1269 = vmatprep.subr.mxu0 0.0
      %1270 = vmatpush1.msra.mxu0 %v261
      %1271 = vmatprep.subr.mxu0 0.0
      %1272 = vmatpush2.msra.mxu0 0.0
      %1273 = vmatprep.subr.mxu0 0.0
      %1274 = vmatpush2.msra.mxu0 0.0
      %1275 = vmatprep.subr.mxu0 0.0
      %1276 = vmatpush2.msra.mxu0 0.0
      %1277 = vmatprep.subr.mxu0 0.0
      %1278 = vmatpush2.msra.mxu0 0.0
      %1279 = vmatprep.subr.mxu0 0.0
      %1280 = vmatpush2.msra.mxu0 0.0
      %1281 = vmatprep.subr.mxu0 0.0
      %1282 = vmatpush2.msra.mxu0 0.0
      %1283 = vmatprep.subr.mxu0 0.0
      %1284 = vmatpush2.msra.mxu0 0.0
      %1285 = vmatprep.subr.mxu0 0.0
      %1286 = vmatpush2.msra.mxu0 0.0
      %1287 = vmatprep.subr.mxu0 0.0
      %1288 = vmatpush2.msra.mxu0 0.0
      %1289 = vmatprep.subr.mxu0 0.0
      %1290 = vmatpush2.msra.mxu0 0.0
      %1291 = vmatprep.subr.mxu0 0.0
      %1292 = vmatpush2.msra.mxu0 0.0
      %1293 = vmatprep.subr.mxu0 0.0
      %1294 = vmatpush2.msra.mxu0 0.0
      %1295 = vmatprep.subr.mxu0 0.0
      %1296 = vmatpush2.msra.mxu0 0.0
      %1297 = vmatprep.subr.mxu0 0.0
      %1298 = vmatpush2.msra.mxu0 0.0
      %1299 = vmatprep.subr.mxu0 0.0
      %1300 = vmatpush2.msra.mxu0 0.0
      %1301 = vmatprep.subr.mxu0 0.0
      %1302 = vmatpush2.msra.mxu0 0.0
      %1303 = vmatprep.mubr.f32.mxu0 0.0
      %1304 = vmatmul.mubr.f32.gmra.mxu0 %v1223
      %v1305 = vpop.f32.mrf.mxu0
      %v1306 = vadd.f32 0.0, %v1305
      %v1307 = vpop.f32.mrf.mxu0
      %1308 = vmatprep.mubr.f32.mxu0 0.0
      %1309 = vmatmul.mubr.f32.gmra.mxu0 %v1224
      %v1310 = vpop.f32.mrf.mxu0
      %v1311 = vadd.f32 0.0, %v1310
      %v1312 = vpop.f32.mrf.mxu0
      %1313 = vmatprep.mubr.f32.mxu0 0.0
      %1314 = vmatmul.mubr.f32.gmra.mxu0 %v1225
      %v1315 = vpop.f32.mrf.mxu0
      %v1316 = vadd.f32 0.0, %v1315
      %v1317 = vpop.f32.mrf.mxu0
      %1318 = vmatprep.mubr.f32.mxu0 0.0
      %1319 = vmatmul.mubr.f32.gmra.mxu0 %v1226
      %v1320 = vpop.f32.mrf.mxu0
      %v1321 = vadd.f32 0.0, %v1320
      %v1322 = vpop.f32.mrf.mxu0
      %1323 = vmatprep.mubr.f32.mxu0 0.0
      %1324 = vmatmul.mubr.f32.gmra.mxu0 %v1227
      %v1325 = vpop.f32.mrf.mxu0
      %v1326 = vadd.f32 0.0, %v1325
      %v1327 = vpop.f32.mrf.mxu0
      %1328 = vmatprep.mubr.f32.mxu0 0.0
      %1329 = vmatmul.mubr.f32.gmra.mxu0 %v1228
      %v1330 = vpop.f32.mrf.mxu0
      %v1331 = vadd.f32 0.0, %v1330
      %v1332 = vpop.f32.mrf.mxu0
      %1333 = vmatprep.mubr.f32.mxu0 0.0
      %1334 = vmatmul.mubr.f32.gmra.mxu0 %v1229
      %v1335 = vpop.f32.mrf.mxu0
      %v1336 = vadd.f32 0.0, %v1335
      %v1337 = vpop.f32.mrf.mxu0
      %1338 = vmatprep.mubr.f32.mxu0 0.0
      %1339 = vmatmul.mubr.f32.gmra.mxu0 %v1230
      %v1340 = vpop.f32.mrf.mxu0
      %v1341 = vadd.f32 0.0, %v1340
      %v1342 = vpop.f32.mrf.mxu0
      %1343 = vmatprep.mubr.f32.mxu0 0.0
      %1344 = vmatmul.mubr.f32.gmra.mxu0 %v1231
      %v1345 = vpop.f32.mrf.mxu0
      %v1346 = vadd.f32 0.0, %v1345
      %v1347 = vpop.f32.mrf.mxu0
      %1348 = vmatprep.mubr.f32.mxu0 0.0
      %1349 = vmatmul.mubr.f32.gmra.mxu0 %v1232
      %v1350 = vpop.f32.mrf.mxu0
      %v1351 = vadd.f32 0.0, %v1350
      %v1352 = vpop.f32.mrf.mxu0
      %1353 = vmatprep.mubr.f32.mxu0 0.0
      %1354 = vmatmul.mubr.f32.gmra.mxu0 %v1233
      %v1355 = vpop.f32.mrf.mxu0
      %v1356 = vadd.f32 0.0, %v1355
      %v1357 = vpop.f32.mrf.mxu0
      %1358 = vmatprep.mubr.f32.mxu0 0.0
      %1359 = vmatmul.mubr.f32.gmra.mxu0 %v1234
      %v1360 = vpop.f32.mrf.mxu0
      %v1361 = vadd.f32 0.0, %v1360
      %v1362 = vpop.f32.mrf.mxu0
      %1363 = vmatprep.mubr.f32.mxu0 0.0
      %1364 = vmatmul.mubr.f32.gmra.mxu0 %v1235
      %v1365 = vpop.f32.mrf.mxu0
      %v1366 = vadd.f32 0.0, %v1365
      %v1367 = vpop.f32.mrf.mxu0
      %1368 = vmatprep.mubr.f32.mxu0 0.0
      %1369 = vmatmul.mubr.f32.gmra.mxu0 %v1236
      %v1370 = vpop.f32.mrf.mxu0
      %v1371 = vadd.f32 0.0, %v1370
      %v1372 = vpop.f32.mrf.mxu0
      %1373 = vmatprep.mubr.f32.mxu0 0.0
      %1374 = vmatmul.mubr.f32.gmra.mxu0 %v1237
      %v1375 = vpop.f32.mrf.mxu0
      %v1376 = vadd.f32 0.0, %v1375
      %v1377 = vpop.f32.mrf.mxu0
      %1378 = vmatprep.mubr.f32.mxu0 0.0
      %1379 = vmatmul.mubr.f32.gmra.mxu0 %v1238
      %v1380 = vpop.f32.mrf.mxu0
      %v1381 = vadd.f32 0.0, %v1380
      %v1382 = vpop.f32.mrf.mxu0
      %1383 = vdwg.mxu0
      %v1384 = vsub.f32 %v624, %v1306
      %v1385 = vsub.f32 %v625, %v1311
      %v1386 = vsub.f32 %v626, %v1316
      %v1387 = vsub.f32 %v627, %v1321
      %v1388 = vsub.f32 %v628, %v1326
      %v1389 = vsub.f32 %v629, %v1331
      %v1390 = vsub.f32 %v630, %v1336
      %v1391 = vsub.f32 %v631, %v1341
      %v1392 = vsub.f32 %v632, %v1346
      %v1393 = vsub.f32 %v633, %v1351
      %v1394 = vsub.f32 %v634, %v1356
      %v1395 = vsub.f32 %v635, %v1361
      %v1396 = vsub.f32 %v636, %v1366
      %v1397 = vsub.f32 %v637, %v1371
      %v1398 = vsub.f32 %v638, %v1376
      %v1399 = vsub.f32 %v639, %v1381
      %v1400 = vmul.f32 %v1384, %v1384
      %v1401 = vmul.f32 %v1385, %v1385
      %v1402 = vmul.f32 %v1386, %v1386
      %v1403 = vmul.f32 %v1387, %v1387
      %v1404 = vmul.f32 %v1388, %v1388
      %v1405 = vmul.f32 %v1389, %v1389
      %v1406 = vmul.f32 %v1390, %v1390
      %v1407 = vmul.f32 %v1391, %v1391
      %v1408 = vmul.f32 %v1392, %v1392
      %v1409 = vmul.f32 %v1393, %v1393
      %v1410 = vmul.f32 %v1394, %v1394
      %v1411 = vmul.f32 %v1395, %v1395
      %v1412 = vmul.f32 %v1396, %v1396
      %v1413 = vmul.f32 %v1397, %v1397
      %v1414 = vmul.f32 %v1398, %v1398
      %v1415 = vmul.f32 %v1399, %v1399
      %1416 = vadd.xlane.f32.xlu0 %v1400
      %v1417 = vpop.xlane.xlu0 %1416
      %1418 = vadd.xlane.f32.xlu0 %v1401
      %v1419 = vpop.xlane.xlu0 %1418
      %1420 = vadd.xlane.f32.xlu0 %v1402
      %v1421 = vpop.xlane.xlu0 %1420
      %1422 = vadd.xlane.f32.xlu0 %v1403
      %v1423 = vpop.xlane.xlu0 %1422
      %1424 = vadd.xlane.f32.xlu0 %v1404
      %v1425 = vpop.xlane.xlu0 %1424
      %1426 = vadd.xlane.f32.xlu0 %v1405
      %v1427 = vpop.xlane.xlu0 %1426
      %1428 = vadd.xlane.f32.xlu0 %v1406
      %v1429 = vpop.xlane.xlu0 %1428
      %1430 = vadd.xlane.f32.xlu0 %v1407
      %v1431 = vpop.xlane.xlu0 %1430
      %1432 = vadd.xlane.f32.xlu0 %v1408
      %v1433 = vpop.xlane.xlu0 %1432
      %1434 = vadd.xlane.f32.xlu0 %v1409
      %v1435 = vpop.xlane.xlu0 %1434
      %1436 = vadd.xlane.f32.xlu0 %v1410
      %v1437 = vpop.xlane.xlu0 %1436
      %1438 = vadd.xlane.f32.xlu0 %v1411
      %v1439 = vpop.xlane.xlu0 %1438
      %1440 = vadd.xlane.f32.xlu0 %v1412
      %v1441 = vpop.xlane.xlu0 %1440
      %1442 = vadd.xlane.f32.xlu0 %v1413
      %v1443 = vpop.xlane.xlu0 %1442
      %1444 = vadd.xlane.f32.xlu0 %v1414
      %v1445 = vpop.xlane.xlu0 %1444
      %1446 = vadd.xlane.f32.xlu0 %v1415
      %v1447 = vpop.xlane.xlu0 %1446
      %v1448 = vlaneseq
      %v1449 = vshrl.u32 %v1448, 7
      %v1450 = vsub.s32 2, %v1449
      %v1451 = vrot.slane %v277, %v1450
      %1452 = vmatprep.subr.mxu0 0.0
      %1453 = vmatpush1.msra.mxu0 %v228
      %1454 = vmatprep.subr.mxu0 0.0
      %1455 = vmatpush1.msra.mxu0 %v227
      %1456 = vmatprep.subr.mxu0 0.0
      %1457 = vmatpush1.msra.mxu0 %v226
      %1458 = vmatprep.subr.mxu0 0.0
      %1459 = vmatpush1.msra.mxu0 %v225
      %1460 = vmatprep.subr.mxu0 0.0
      %1461 = vmatpush1.msra.mxu0 %v224
      %1462 = vmatprep.subr.mxu0 0.0
      %1463 = vmatpush1.msra.mxu0 %v223
      %1464 = vmatprep.subr.mxu0 0.0
      %1465 = vmatpush1.msra.mxu0 %v222
      %1466 = vmatprep.subr.mxu0 0.0
      %1467 = vmatpush1.msra.mxu0 %v221
      %1468 = vmatprep.subr.mxu0 0.0
      %1469 = vmatpush1.msra.mxu0 %v220
      %1470 = vmatprep.subr.mxu0 0.0
      %1471 = vmatpush1.msra.mxu0 %v219
      %1472 = vmatprep.subr.mxu0 0.0
      %1473 = vmatpush1.msra.mxu0 %v218
      %1474 = vmatprep.subr.mxu0 0.0
      %1475 = vmatpush1.msra.mxu0 %v217
      %1476 = vmatprep.subr.mxu0 0.0
      %1477 = vmatpush1.msra.mxu0 %v216
      %1478 = vmatprep.subr.mxu0 0.0
      %1479 = vmatpush1.msra.mxu0 %v215
      %1480 = vmatprep.subr.mxu0 0.0
      %1481 = vmatpush1.msra.mxu0 %v214
      %1482 = vmatprep.subr.mxu0 0.0
      %1483 = vmatpush1.msra.mxu0 %v213
      %1484 = vmatprep.subr.mxu0 0.0
      %1485 = vmatpush2.msra.mxu0 %v244
      %1486 = vmatprep.subr.mxu0 0.0
      %1487 = vmatpush2.msra.mxu0 %v243
      %1488 = vmatprep.subr.mxu0 0.0
      %1489 = vmatpush2.msra.mxu0 %v242
      %1490 = vmatprep.subr.mxu0 0.0
      %1491 = vmatpush2.msra.mxu0 %v241
      %1492 = vmatprep.subr.mxu0 0.0
      %1493 = vmatpush2.msra.mxu0 %v240
      %1494 = vmatprep.subr.mxu0 0.0
      %1495 = vmatpush2.msra.mxu0 %v239
      %1496 = vmatprep.subr.mxu0 0.0
      %1497 = vmatpush2.msra.mxu0 %v238
      %1498 = vmatprep.subr.mxu0 0.0
      %1499 = vmatpush2.msra.mxu0 %v237
      %1500 = vmatprep.subr.mxu0 0.0
      %1501 = vmatpush2.msra.mxu0 %v236
      %1502 = vmatprep.subr.mxu0 0.0
      %1503 = vmatpush2.msra.mxu0 %v235
      %1504 = vmatprep.subr.mxu0 0.0
      %1505 = vmatpush2.msra.mxu0 %v234
      %1506 = vmatprep.subr.mxu0 0.0
      %1507 = vmatpush2.msra.mxu0 %v233
      %1508 = vmatprep.subr.mxu0 0.0
      %1509 = vmatpush2.msra.mxu0 %v232
      %1510 = vmatprep.subr.mxu0 0.0
      %1511 = vmatpush2.msra.mxu0 %v231
      %1512 = vmatprep.subr.mxu0 0.0
      %1513 = vmatpush2.msra.mxu0 %v230
      %1514 = vmatprep.subr.mxu0 0.0
      %1515 = vmatpush2.msra.mxu0 %v229
      %1516 = vmatprep.mubr.f32.mxu0 %v1306
      %1517 = vmatmul.mubr.f32.gmra.mxu0 %v459
      %v1518 = vpop.f32.mrf.mxu0
      %v1519 = vadd.f32 %v1451, %v1518
      %v1520 = vpop.f32.mrf.mxu0
      %1521 = vmatprep.mubr.f32.mxu0 %v1311
      %1522 = vmatmul.mubr.f32.gmra.mxu0 %v460
      %v1523 = vpop.f32.mrf.mxu0
      %v1524 = vadd.f32 %v1451, %v1523
      %v1525 = vpop.f32.mrf.mxu0
      %1526 = vmatprep.mubr.f32.mxu0 %v1316
      %1527 = vmatmul.mubr.f32.gmra.mxu0 %v461
      %v1528 = vpop.f32.mrf.mxu0
      %v1529 = vadd.f32 %v1451, %v1528
      %v1530 = vpop.f32.mrf.mxu0
      %1531 = vmatprep.mubr.f32.mxu0 %v1321
      %1532 = vmatmul.mubr.f32.gmra.mxu0 %v462
      %v1533 = vpop.f32.mrf.mxu0
      %v1534 = vadd.f32 %v1451, %v1533
      %v1535 = vpop.f32.mrf.mxu0
      %1536 = vmatprep.mubr.f32.mxu0 %v1326
      %1537 = vmatmul.mubr.f32.gmra.mxu0 %v463
      %v1538 = vpop.f32.mrf.mxu0
      %v1539 = vadd.f32 %v1451, %v1538
      %v1540 = vpop.f32.mrf.mxu0
      %1541 = vmatprep.mubr.f32.mxu0 %v1331
      %1542 = vmatmul.mubr.f32.gmra.mxu0 %v464
      %v1543 = vpop.f32.mrf.mxu0
      %v1544 = vadd.f32 %v1451, %v1543
      %v1545 = vpop.f32.mrf.mxu0
      %1546 = vmatprep.mubr.f32.mxu0 %v1336
      %1547 = vmatmul.mubr.f32.gmra.mxu0 %v465
      %v1548 = vpop.f32.mrf.mxu0
      %v1549 = vadd.f32 %v1451, %v1548
      %v1550 = vpop.f32.mrf.mxu0
      %1551 = vmatprep.mubr.f32.mxu0 %v1341
      %1552 = vmatmul.mubr.f32.gmra.mxu0 %v466
      %v1553 = vpop.f32.mrf.mxu0
      %v1554 = vadd.f32 %v1451, %v1553
      %v1555 = vpop.f32.mrf.mxu0
      %1556 = vmatprep.mubr.f32.mxu0 %v1346
      %1557 = vmatmul.mubr.f32.gmra.mxu0 %v467
      %v1558 = vpop.f32.mrf.mxu0
      %v1559 = vadd.f32 %v1451, %v1558
      %v1560 = vpop.f32.mrf.mxu0
      %1561 = vmatprep.mubr.f32.mxu0 %v1351
      %1562 = vmatmul.mubr.f32.gmra.mxu0 %v468
      %v1563 = vpop.f32.mrf.mxu0
      %v1564 = vadd.f32 %v1451, %v1563
      %v1565 = vpop.f32.mrf.mxu0
      %1566 = vmatprep.mubr.f32.mxu0 %v1356
      %1567 = vmatmul.mubr.f32.gmra.mxu0 %v469
      %v1568 = vpop.f32.mrf.mxu0
      %v1569 = vadd.f32 %v1451, %v1568
      %v1570 = vpop.f32.mrf.mxu0
      %1571 = vmatprep.mubr.f32.mxu0 %v1361
      %1572 = vmatmul.mubr.f32.gmra.mxu0 %v470
      %v1573 = vpop.f32.mrf.mxu0
      %v1574 = vadd.f32 %v1451, %v1573
      %v1575 = vpop.f32.mrf.mxu0
      %1576 = vmatprep.mubr.f32.mxu0 %v1366
      %1577 = vmatmul.mubr.f32.gmra.mxu0 %v471
      %v1578 = vpop.f32.mrf.mxu0
      %v1579 = vadd.f32 %v1451, %v1578
      %v1580 = vpop.f32.mrf.mxu0
      %1581 = vmatprep.mubr.f32.mxu0 %v1371
      %1582 = vmatmul.mubr.f32.gmra.mxu0 %v472
      %v1583 = vpop.f32.mrf.mxu0
      %v1584 = vadd.f32 %v1451, %v1583
      %v1585 = vpop.f32.mrf.mxu0
      %1586 = vmatprep.mubr.f32.mxu0 %v1376
      %1587 = vmatmul.mubr.f32.gmra.mxu0 %v473
      %v1588 = vpop.f32.mrf.mxu0
      %v1589 = vadd.f32 %v1451, %v1588
      %v1590 = vpop.f32.mrf.mxu0
      %1591 = vmatprep.mubr.f32.mxu0 %v1381
      %1592 = vmatmul.mubr.f32.gmra.mxu0 %v474
      %v1593 = vpop.f32.mrf.mxu0
      %v1594 = vadd.f32 %v1451, %v1593
      %v1595 = vpop.f32.mrf.mxu0
      %1596 = vdwg.mxu0
      %vm1597 = vcmp.eq.s32.totalorder %v934, 0
      %v1598 = vcvt.s32.f32 %v980
      %v1599 = vcvt.s32.f32 %v994
      %v1600 = vcvt.s32.f32 %v1008
      %v1601 = vcvt.s32.f32 %v1022
      %v1602 = vcvt.s32.f32 %v1036
      %v1603 = vcvt.s32.f32 %v1050
      %v1604 = vcvt.s32.f32 %v1064
      %v1605 = vcvt.s32.f32 %v1078
      %v1606 = vcvt.s32.f32 %v1092
      %v1607 = vcvt.s32.f32 %v1106
      %v1608 = vcvt.s32.f32 %v1120
      %v1609 = vcvt.s32.f32 %v1134
      %v1610 = vcvt.s32.f32 %v1148
      %v1611 = vcvt.s32.f32 %v1162
      %v1612 = vcvt.s32.f32 %v1176
      %v1613 = vcvt.s32.f32 %v1190
      %v1614 = vsel %vm1597, %v1598, 0.0
      %v1615 = vsel %vm1597, %v1599, 0.0
      %v1616 = vsel %vm1597, %v1600, 0.0
      %v1617 = vsel %vm1597, %v1601, 0.0
      %v1618 = vsel %vm1597, %v1602, 0.0
      %v1619 = vsel %vm1597, %v1603, 0.0
      %v1620 = vsel %vm1597, %v1604, 0.0
      %v1621 = vsel %vm1597, %v1605, 0.0
      %v1622 = vsel %vm1597, %v1606, 0.0
      %v1623 = vsel %vm1597, %v1607, 0.0
      %v1624 = vsel %vm1597, %v1608, 0.0
      %v1625 = vsel %vm1597, %v1609, 0.0
      %v1626 = vsel %vm1597, %v1610, 0.0
      %v1627 = vsel %vm1597, %v1611, 0.0
      %v1628 = vsel %vm1597, %v1612, 0.0
      %v1629 = vsel %vm1597, %v1613, 0.0
      %vm1630 = vcmp.eq.s32.totalorder %v934, 1
      %v1631 = vsel %vm1630, %v1417, 0.0
      %v1632 = vsel %vm1630, %v1419, 0.0
      %v1633 = vsel %vm1630, %v1421, 0.0
      %v1634 = vsel %vm1630, %v1423, 0.0
      %v1635 = vsel %vm1630, %v1425, 0.0
      %v1636 = vsel %vm1630, %v1427, 0.0
      %v1637 = vsel %vm1630, %v1429, 0.0
      %v1638 = vsel %vm1630, %v1431, 0.0
      %v1639 = vsel %vm1630, %v1433, 0.0
      %v1640 = vsel %vm1630, %v1435, 0.0
      %v1641 = vsel %vm1630, %v1437, 0.0
      %v1642 = vsel %vm1630, %v1439, 0.0
      %v1643 = vsel %vm1630, %v1441, 0.0
      %v1644 = vsel %vm1630, %v1443, 0.0
      %v1645 = vsel %vm1630, %v1445, 0.0
      %v1646 = vsel %vm1630, %v1447, 0.0
      %v1647 = vadd.f32 %v1614, %v1631
      %v1648 = vadd.f32 %v1615, %v1632
      %v1649 = vadd.f32 %v1616, %v1633
      %v1650 = vadd.f32 %v1617, %v1634
      %v1651 = vadd.f32 %v1618, %v1635
      %v1652 = vadd.f32 %v1619, %v1636
      %v1653 = vadd.f32 %v1620, %v1637
      %v1654 = vadd.f32 %v1621, %v1638
      %v1655 = vadd.f32 %v1622, %v1639
      %v1656 = vadd.f32 %v1623, %v1640
      %v1657 = vadd.f32 %v1624, %v1641
      %v1658 = vadd.f32 %v1625, %v1642
      %v1659 = vadd.f32 %v1626, %v1643
      %v1660 = vadd.f32 %v1627, %v1644
      %v1661 = vadd.f32 %v1628, %v1645
      %v1662 = vadd.f32 %v1629, %v1646
      %1663 = vst [vmem:[%s147] sm:$0xff] %v1519
      %1664 = vst [vmem:[%s147 + $0x8] sm:$0xff] %v1306
      %1665 = vst [vmem:[%s147 + $0x10] sm:$0xff] %v1647
      %1666 = vst [vmem:[%s147 + $0x18] sm:$0xff] %v1524
      %1667 = vst [vmem:[%s147 + $0x20] sm:$0xff] %v1311
      %1668 = vst [vmem:[%s147 + $0x28] sm:$0xff] %v1648
      %1669 = vst [vmem:[%s147 + $0x30] sm:$0xff] %v1529
      %1670 = vst [vmem:[%s147 + $0x38] sm:$0xff] %v1316
      %1671 = vst [vmem:[%s147 + $0x40] sm:$0xff] %v1649
      %1672 = vst [vmem:[%s147 + $0x48] sm:$0xff] %v1534
      %1673 = vst [vmem:[%s147 + $0x50] sm:$0xff] %v1321
      %1674 = vst [vmem:[%s147 + $0x58] sm:$0xff] %v1650
      %1675 = vst [vmem:[%s147 + $0x60] sm:$0xff] %v1539
      %1676 = vst [vmem:[%s147 + $0x68] sm:$0xff] %v1326
      %1677 = vst [vmem:[%s147 + $0x70] sm:$0xff] %v1651
      %1678 = vst [vmem:[%s147 + $0x78] sm:$0xff] %v1544
      %1679 = vst [vmem:[%s147 + $0x80] sm:$0xff] %v1331
      %1680 = vst [vmem:[%s147 + $0x88] sm:$0xff] %v1652
      %1681 = vst [vmem:[%s147 + $0x90] sm:$0xff] %v1549
      %1682 = vst [vmem:[%s147 + $0x98] sm:$0xff] %v1336
      %1683 = vst [vmem:[%s147 + $0xa0] sm:$0xff] %v1653
      %1684 = vst [vmem:[%s147 + $0xa8] sm:$0xff] %v1554
      %1685 = vst [vmem:[%s147 + $0xb0] sm:$0xff] %v1341
      %1686 = vst [vmem:[%s147 + $0xb8] sm:$0xff] %v1654
      %1687 = vst [vmem:[%s147 + $0xc0] sm:$0xff] %v1559
      %1688 = vst [vmem:[%s147 + $0xc8] sm:$0xff] %v1346
      %1689 = vst [vmem:[%s147 + $0xd0] sm:$0xff] %v1655
      %1690 = vst [vmem:[%s147 + $0xd8] sm:$0xff] %v1564
      %1691 = vst [vmem:[%s147 + $0xe0] sm:$0xff] %v1351
      %1692 = vst [vmem:[%s147 + $0xe8] sm:$0xff] %v1656
      %1693 = vst [vmem:[%s147 + $0xf0] sm:$0xff] %v1569
      %1694 = vst [vmem:[%s147 + $0xf8] sm:$0xff] %v1356
      %1695 = vst [vmem:[%s147 + $0x100] sm:$0xff] %v1657
      %1696 = vst [vmem:[%s147 + $0x108] sm:$0xff] %v1574
      %1697 = vst [vmem:[%s147 + $0x110] sm:$0xff] %v1361
      %1698 = vst [vmem:[%s147 + $0x118] sm:$0xff] %v1658
      %1699 = vst [vmem:[%s147 + $0x120] sm:$0xff] %v1579
      %1700 = vst [vmem:[%s147 + $0x128] sm:$0xff] %v1366
      %1701 = vst [vmem:[%s147 + $0x130] sm:$0xff] %v1659
      %1702 = vst [vmem:[%s147 + $0x138] sm:$0xff] %v1584
      %1703 = vst [vmem:[%s147 + $0x140] sm:$0xff] %v1371
      %1704 = vst [vmem:[%s147 + $0x148] sm:$0xff] %v1660
      %1705 = vst [vmem:[%s147 + $0x150] sm:$0xff] %v1589
      %1706 = vst [vmem:[%s147 + $0x158] sm:$0xff] %v1376
      %1707 = vst [vmem:[%s147 + $0x160] sm:$0xff] %v1661
      %1708 = vst [vmem:[%s147 + $0x168] sm:$0xff] %v1594
      %1709 = vst [vmem:[%s147 + $0x170] sm:$0xff] %v1381
      %1710 = vst [vmem:[%s147 + $0x178] sm:$0xff] %v1662
      %s1711 = smul.u32 16, %s13
      %p1712 = scmp.lt.s32.totalorder %s1711, 31
      %s1713 = scalar_select %p1712, %s1711, 31
      %s1714 = smul.addr %s1713, 3
      %s1715 = smul.addr %s1714, 8
      %s1716 = scalar_lea.vmem %s2, %s1715
      // Predicated region
      $region29: #{factor_vqvae_forward.1} parent=27 // pred_check
        %p1717 = pneg %p78
      $region30: #{factor_vqvae_forward.1} parent=27 // pred_check_branch
        %1719 = sbr.rel (%p1717) target = $region32
      $region31: #{factor_vqvae_forward.1} parent=27 // pred_region
        %s1720 = smul.u32 16, %s13
      $region32: #{factor_vqvae_forward.1} parent=27 // pred_fallthru
        _
    $region28: #{factor_vqvae_forward.1} parent=5 // pred_fallthru
      _
    %p1721 = scmp.le.s32.totalorder 2, %s8
    // Predicated region
    $region33: #{factor_vqvae_forward.1} parent=5 // pred_check
      %p1722 = pneg %p1721
    $region34: #{factor_vqvae_forward.1} parent=5 // pred_check_branch
      %1724 = sbr.rel (%p1722) target = $region36
    $region35: #{factor_vqvae_forward.1} parent=5 // pred_region
      %s1725 = ssub.s32 %s8, 2
      // Predicated region
      $region37: #{factor_vqvae_forward.1} parent=35 // pred_check
        %p1726 = pneg %p84
      $region38: #{factor_vqvae_forward.1} parent=35 // pred_check_branch
        %1728 = sbr.rel (%p1726) target = $region40
      $region39: #{factor_vqvae_forward.1} parent=35 // pred_region
        %s1729 = smul.u32 16, %s14
        %p1730 = scmp.lt.s32.totalorder %s1729, 31
        %s1731 = scalar_select %p1730, %s1729, 31
        %s1732 = smul.addr %s1731, 3
        %s1733 = smul.addr %s1732, 8
        %s1734 = scalar_lea.vmem %s2, %s1733
      $region40: #{factor_vqvae_forward.1} parent=35 // pred_fallthru
        _
    $region36: #{factor_vqvae_forward.1} parent=5 // pred_fallthru
      _
  $region6: #{factor_vqvae_forward.1} parent=0 // loop_footer
    %s12 = sadd.s32 1, %s8
  $region7: #{factor_vqvae_forward.1} parent=0 // loop_footer_branch
    %7 = sbr.rel target = $region3
  $region8: #{factor_vqvae_forward.1} parent=0 // loop_exit
    _

</llo_original>
